<compile_context>
chip_gen: v5e
topology: v5e:2x2
jax: 0.10.0
libtpu: 0.0.40
codegen_flags: <defaults>
</compile_context>

<pallas_src>
import functools

import numpy as np
import jax
import jax.numpy as jnp
from jax import lax
from jax.experimental import pallas as pl
from jax.experimental.pallas import tpu as pltpu


def _round_up(x, m):
    return ((x + m - 1) // m) * m


def _pick_tile_h(H, Wc, N):
    """Pick (TH, padded H) balancing MXU fill vs. grid steps.

    Prefer the smallest TH with TH*Wc >= 256 (fills the 256-wide MXU M-dim on
    v6e/v7x) that still leaves >= 4 grid steps (>= 2 per TensorCore after v7x
    megacore sharding, and enough steps to pipeline the output writeback);
    otherwise the largest TH keeping >= 4 steps; otherwise a small padded TH.
    Odd H (19, 10, 5, 3, 1) is padded up instead of falling back to TH=H.
    """
    cands = (2, 4, 8, 16, 32)
    for th in cands:
        hp = _round_up(H, th)
        if th * Wc >= 256 and N * (hp // th) >= 4:
            return th, hp
    for th in reversed(cands):
        hp = _round_up(H, th)
        if N * (hp // th) >= 4:
            return th, hp
    th = min(8, _round_up(max(H, 1), 2))
    return th, _round_up(H, th)


def ssd_head_kernel(xpad_ref, dww_ref, bnb_ref, pww_ref, pwb_ref, out_ref,
                    *, TH, Wc, Wpad, Cp, mac_dtype):
    # xpad_ref : (1, Hp+2, Wpad, Cp)  spatially pre-padded input (one batch elem),
    #                                 resident across the h grid axis (bf16)
    # dww_ref  : (3, 3, Cp)           depthwise 3x3 weights with BN scale folded in
    # bnb_ref  : (1, Cp)              folded BN bias = beta - mean * gamma/sqrt(var+eps)
    # pww_ref  : (Cp, ATp)            1x1 conv weight as a channel matmul (bf16, lane-dense)
    # pwb_ref  : (1, ATp)             1x1 conv bias (zero-padded)
    # out_ref  : (1, TH*Wc, ATp)      output rows for this H-tile
    h = pl.program_id(1)
    row0 = pl.multiple_of(h * TH, TH)

    # H-tile slab with a +2-row halo; slicing the major (H) axis is cheap.
    x = xpad_ref[0, pl.ds(row0, TH + 2)].astype(mac_dtype)   # (TH+2, Wpad, Cp)
    w = dww_ref[...].astype(mac_dtype)                       # (3, 3, Cp), BN-folded

    # Width shifts via sublane rolls (XLU slot, idle during the VPU MAC loop):
    # x_kw[k][:, j, :] == x[:, j + k, :] for the kept columns j < Wc, because
    # Wpad >= Wc + 2 guarantees no wraparound reaches them.
    x_kw = (x,
            pltpu.roll(x, Wpad - 1, axis=1),
            pltpu.roll(x, Wpad - 2, axis=1))

    # Depthwise 3x3 conv (stride 1, pad 1) as 9 shifted MACs (VPU).  All slices
    # are aligned re-views (Wc, Wpad multiples of 8; Cp multiple of 128).
    # First tap also initializes the accumulator with the folded BN bias.
    acc = x_kw[0][0:TH, 0:Wc, :] * w[0, 0] + bnb_ref[0].astype(mac_dtype)
    for kh in range(3):
        for kw in range(3):
            if kh == 0 and kw == 0:
                continue
            acc = acc + x_kw[kw][kh:kh + TH, 0:Wc, :] * w[kh, kw]

    # ReLU6, then 1x1 conv == channel matmul on the MXU (bf16 pass, f32 acc).
    y = jnp.clip(acc, 0.0, 6.0)
    y2 = y.reshape(TH * Wc, Cp).astype(pww_ref.dtype)        # free re-view + cast
    out = jnp.dot(y2, pww_ref[...], preferred_element_type=jnp.float32) + pwb_ref[0]
    out_ref[0] = out


def make_ssd_head_params(key, c, num_anchors, task_len):
    """Deterministic synthetic parameters mirroring the PyTorch module's shapes."""
    at = num_anchors * task_len
    k = jax.random.split(key, 7)
    # depthwise Conv2d(c, c, 3, groups=c, bias=False): torch weight (c, 1, 3, 3)
    dw_w_torch = jax.random.normal(k[0], (c, 1, 3, 3), jnp.float32) * 0.1
    # BatchNorm2d(c, eps=1e-3)
    bn_gamma = 1.0 + 0.1 * jax.random.normal(k[1], (c,), jnp.float32)
    bn_beta = 0.1 * jax.random.normal(k[2], (c,), jnp.float32)
    bn_mean = 0.1 * jax.random.normal(k[3], (c,), jnp.float32)
    bn_var = jnp.abs(jax.random.normal(k[4], (c,), jnp.float32)) + 0.5
    # 1x1 Conv2d(c, num_anchors*task_len, 1): torch weight (at, c, 1, 1), bias (at,)
    pw_w_torch = jax.random.normal(k[5], (at, c, 1, 1), jnp.float32) * 0.1
    pw_b = 0.1 * jax.random.normal(k[6], (at,), jnp.float32)
    return dict(dw_w=dw_w_torch, bn_gamma=bn_gamma, bn_beta=bn_beta,
                bn_mean=bn_mean, bn_var=bn_var, pw_w=pw_w_torch, pw_b=pw_b)


def ssd_head_forward(x_nchw, params, num_anchors, task_len, bn_eps=1e-3,
                     tile_h=None, storage_dtype=jnp.bfloat16,
                     mac_dtype=jnp.float32):
    N, C, H, W = x_nchw.shape
    AT = num_anchors * task_len

    # ---- lane/sublane-dense padding targets ----
    Cp = _round_up(C, 128)          # lane dim of activations / matmul K
    ATp = _round_up(AT, 128)        # matmul N / output lane dim (dense vst)
    Wc = _round_up(W, 8)            # compute width: aligned slices & free reshape
    Wpad = Wc + 8                   # padded input width (>= Wc + 2, multiple of 8)
    if tile_h is None:
        TH, Hp = _pick_tile_h(H, Wc, N)
    else:
        TH, Hp = tile_h, _round_up(H, tile_h)

    # ---- fold BN into the depthwise conv (glue, plain JAX) ----
    scale = params["bn_gamma"] / jnp.sqrt(params["bn_var"] + bn_eps)     # (C,)
    bias = params["bn_beta"] - params["bn_mean"] * scale                 # (C,)
    dw = jnp.transpose(params["dw_w"][:, 0], (1, 2, 0)) * scale          # (3, 3, C)
    dw = jnp.pad(dw, ((0, 0), (0, 0), (0, Cp - C))).astype(jnp.float32)  # (3, 3, Cp)
    bnb = jnp.pad(bias, (0, Cp - C)).reshape(1, Cp).astype(jnp.float32)
    pw = jnp.transpose(params["pw_w"][:, :, 0, 0], (1, 0))               # (C, AT)
    pw = jnp.pad(pw, ((0, Cp - C), (0, ATp - AT))).astype(storage_dtype)  # (Cp, ATp)
    pwb = jnp.pad(params["pw_b"], (0, ATp - AT)).reshape(1, ATp).astype(jnp.float32)

    # ---- input re-layout + spatial/channel pad (glue) ----
    # TODO(synk): if the backbone can emit NHWC directly, drop this transpose
    #             (a full extra HBM round-trip of the feature map) and reuse the
    #             padded buffer across the loc/conf heads of the same scale.
    x = jnp.transpose(x_nchw, (0, 2, 3, 1))                              # NHWC
    xpad = jnp.pad(x, ((0, 0), (1, 1 + Hp - H), (1, Wpad - W - 1), (0, Cp - C)))
    xpad = xpad.astype(storage_dtype)                                    # (N,Hp+2,Wpad,Cp)

    kern = functools.partial(ssd_head_kernel, TH=TH, Wc=Wc, Wpad=Wpad, Cp=Cp,
                             mac_dtype=mac_dtype)

    # VMEM budget: image block + pw weights (<=2 buffers each), double-buffered
    # output block, and the f32 temporaries of the kernel body; 2x headroom,
    # capped at v7x physical VMEM.
    sb = jnp.dtype(storage_dtype).itemsize
    est = (2 * (Hp + 2) * Wpad * Cp * sb
           + 2 * Cp * ATp * sb
           + 2 * TH * Wc * ATp * 4
           + 4 * (TH + 2) * Wpad * Cp * 4)
    vmem_limit = int(min(max(2 * est, 32 * 1024 * 1024), 64 * 1024 * 1024))

    def build(use_buffered):
        def in_spec(shape, imap):
            if use_buffered:
                # h-/grid-invariant blocks: single buffer (halves the largest
                # VMEM residents — important on v7x's 64 MiB VMEM).
                return pl.BlockSpec(shape, imap, pipeline_mode=pl.Buffered(1))
            return pl.BlockSpec(shape, imap)

        return pl.pallas_call(
            kern,
            out_shape=jax.ShapeDtypeStruct((N, Hp * Wc, ATp), jnp.float32),
            grid=(N, Hp // TH),
            in_specs=[
                # full padded image per n; block index is h-invariant so it is
                # DMA'd once per batch element and reused across the h axis.
                in_spec((1, Hp + 2, Wpad, Cp), lambda n, h: (n, 0, 0, 0)),
                in_spec((3, 3, Cp), lambda n, h: (0, 0, 0)),
                in_spec((1, Cp), lambda n, h: (0, 0)),
                in_spec((Cp, ATp), lambda n, h: (0, 0)),
                in_spec((1, ATp), lambda n, h: (0, 0)),
            ],
            out_specs=pl.BlockSpec((1, TH * Wc, ATp), lambda n, h: (n, h, 0)),
            compiler_params=pltpu.CompilerParams(
                dimension_semantics=("parallel", "parallel"),
                vmem_limit_bytes=vmem_limit),
        )

    try:
        out = jax.block_until_ready(build(True)(xpad, dw, bnb, pw, pwb))
    except Exception:
        # pipeline_mode=pl.Buffered(1) unsupported on this Pallas version:
        # fall back to default double-buffering (correct, slightly more VMEM).
        out = build(False)(xpad, dw, bnb, pw, pwb)

    # crop the H/W/AT padding, then (N, H, W, A*T) -> (N, H*W*A, T)
    # == torch permute(0,2,3,1).reshape(N, -1, T)
    out = out.reshape(N, Hp, Wc, ATp)[:, :H, :W, :AT]
    return out.reshape(N, H * W * num_anchors, task_len)


def ssd_head_reference(x_nchw, params, num_anchors, task_len, bn_eps=1e-3):
    """Pure-JAX reference (independent implementation) for correctness check."""
    N, C, H, W = x_nchw.shape
    x = jnp.transpose(x_nchw, (0, 2, 3, 1)).astype(jnp.float32)  # NHWC
    dw_w = jnp.transpose(params["dw_w"][:, 0], (1, 2, 0)).reshape(3, 3, 1, C)
    y = lax.conv_general_dilated(
        x, dw_w, window_strides=(1, 1), padding="SAME",
        feature_group_count=C,
        dimension_numbers=("NHWC", "HWIO", "NHWC"))
    scale = params["bn_gamma"] / jnp.sqrt(params["bn_var"] + bn_eps)
    bias = params["bn_beta"] - params["bn_mean"] * scale
    y = jnp.clip(y * scale + bias, 0.0, 6.0)
    pw_w = jnp.transpose(params["pw_w"][:, :, 0, 0], (1, 0))     # (C, AT)
    out = jnp.einsum("nhwc,ck->nhwk", y, pw_w,
                     precision=lax.Precision.HIGHEST) + params["pw_b"]
    return out.reshape(N, H * W * num_anchors, task_len)


if __name__ == "__main__":
    key = jax.random.PRNGKey(0)
    k_x, k_p = jax.random.split(key)

    N, C, H, W = 2, 8, 16, 16
    num_anchors, task_len = 4, 4

    x = jax.random.normal(k_x, (N, C, H, W), jnp.float32)   # PyTorch-style NCHW input
    params = make_ssd_head_params(k_p, C, num_anchors, task_len)

    out = ssd_head_forward(x, params, num_anchors, task_len)
    out = jax.block_until_ready(out)

    ref = ssd_head_reference(x, params, num_anchors, task_len)
    assert out.shape == (N, H * W * num_anchors, task_len), out.shape
    # Tolerance reflects bf16 storage of the feature map / 1x1 weights and the
    # single-pass bf16 MXU matmul vs. the fp32 Precision.HIGHEST reference;
    # structural errors would be O(1e-1)+.
    np.testing.assert_allclose(np.asarray(out), np.asarray(ref), rtol=2e-2, atol=2e-2)

    print("KERNEL_OK")
</pallas_src>

<mosaic_0001>
module attributes {stable_mosaic.version = 11 : i64} {
  func.func @ssd_head_kernel(%arg0: i32, %arg1: i32, %arg2: memref<1x18x24x128xbf16, #tpu.memory_space<vmem>>, %arg3: memref<3x3x128xf32, #tpu.memory_space<vmem>>, %arg4: memref<1x128xf32, #tpu.memory_space<vmem>>, %arg5: memref<128x128xbf16, #tpu.memory_space<vmem>>, %arg6: memref<1x128xf32, #tpu.memory_space<vmem>>, %arg7: memref<1x128x128xf32, #tpu.memory_space<vmem>>) attributes {dimension_semantics = [#tpu.dimension_semantics<parallel>, #tpu.dimension_semantics<parallel>], iteration_bounds = array<i64: 2, 2>, scalar_prefetch = 0 : i64, scratch_operands = 0 : i64, tpu.core_type = #tpu.core_type<tc>, window_params = [{pipeline_mode = #tpu.pipeline_mode<synchronous>, transform_indices = @transform_0, window_bounds = array<i64: 1, 18, 24, 128>}, {pipeline_mode = #tpu.pipeline_mode<synchronous>, transform_indices = @transform_1, window_bounds = array<i64: 3, 3, 128>}, {pipeline_mode = #tpu.pipeline_mode<synchronous>, transform_indices = @transform_2, window_bounds = array<i64: 1, 128>}, {pipeline_mode = #tpu.pipeline_mode<synchronous>, transform_indices = @transform_3, window_bounds = array<i64: 128, 128>}, {pipeline_mode = #tpu.pipeline_mode<synchronous>, transform_indices = @transform_4, window_bounds = array<i64: 1, 128>}, {transform_indices = @transform_5, window_bounds = array<i64: 1, 128, 128>}]} {
    %c8_i32 = arith.constant 8 : i32
    %0 = arith.muli %arg1, %c8_i32 : i32
    %1 = tpu.assume_multiple %0, 8 : i32
    %c0 = arith.constant 0 : index
    %2 = arith.index_cast %1 : i32 to index
    %c0_0 = arith.constant 0 : index
    %c0_1 = arith.constant 0 : index
    %3 = vector.load %arg2[%c0, %2, %c0_0, %c0_1] : memref<1x18x24x128xbf16, #tpu.memory_space<vmem>>, vector<1x10x24x128xbf16>
    %4 = vector.shape_cast %3 : vector<1x10x24x128xbf16> to vector<10x24x128xbf16>
    %5 = arith.extf %4 : vector<10x24x128xbf16> to vector<10x24x128xf32>
    %c0_2 = arith.constant 0 : index
    %c0_3 = arith.constant 0 : index
    %c0_4 = arith.constant 0 : index
    %6 = vector.load %arg3[%c0_2, %c0_3, %c0_4] : memref<3x3x128xf32, #tpu.memory_space<vmem>>, vector<3x3x128xf32>
    %c23_i32 = arith.constant 23 : i32
    %7 = tpu.dynamic_rotate %5 by %c23_i32 dim 1 : vector<10x24x128xf32>, i32 -> vector<10x24x128xf32>
    %c22_i32 = arith.constant 22 : i32
    %8 = tpu.dynamic_rotate %5 by %c22_i32 dim 1 : vector<10x24x128xf32>, i32 -> vector<10x24x128xf32>
    %9 = vector.extract_strided_slice %5 {offsets = [0, 0, 0], sizes = [8, 16, 128], strides = [1, 1, 1]} : vector<10x24x128xf32> to vector<8x16x128xf32>
    %10 = vector.extract_strided_slice %6 {offsets = [0, 0, 0], sizes = [1, 1, 128], strides = [1, 1, 1]} : vector<3x3x128xf32> to vector<1x1x128xf32>
    %11 = vector.shape_cast %10 : vector<1x1x128xf32> to vector<128xf32>
    %12 = vector.shape_cast %11 : vector<128xf32> to vector<1x1x128xf32>
    %13 = vector.broadcast %12 : vector<1x1x128xf32> to vector<8x16x128xf32>
    %14 = arith.mulf %9, %13 : vector<8x16x128xf32>
    %c0_5 = arith.constant 0 : index
    %c0_6 = arith.constant 0 : index
    %15 = vector.load %arg4[%c0_5, %c0_6] : memref<1x128xf32, #tpu.memory_space<vmem>>, vector<1x128xf32>
    %16 = vector.shape_cast %15 : vector<1x128xf32> to vector<128xf32>
    %17 = vector.shape_cast %16 : vector<128xf32> to vector<1x1x128xf32>
    %18 = vector.broadcast %17 : vector<1x1x128xf32> to vector<8x16x128xf32>
    %19 = arith.addf %14, %18 : vector<8x16x128xf32>
    %20 = vector.extract_strided_slice %7 {offsets = [0, 0, 0], sizes = [8, 16, 128], strides = [1, 1, 1]} : vector<10x24x128xf32> to vector<8x16x128xf32>
    %21 = vector.extract_strided_slice %6 {offsets = [0, 1, 0], sizes = [1, 1, 128], strides = [1, 1, 1]} : vector<3x3x128xf32> to vector<1x1x128xf32>
    %22 = vector.shape_cast %21 : vector<1x1x128xf32> to vector<128xf32>
    %23 = vector.shape_cast %22 : vector<128xf32> to vector<1x1x128xf32>
    %24 = vector.broadcast %23 : vector<1x1x128xf32> to vector<8x16x128xf32>
    %25 = arith.mulf %20, %24 : vector<8x16x128xf32>
    %26 = arith.addf %19, %25 : vector<8x16x128xf32>
    %27 = vector.extract_strided_slice %8 {offsets = [0, 0, 0], sizes = [8, 16, 128], strides = [1, 1, 1]} : vector<10x24x128xf32> to vector<8x16x128xf32>
    %28 = vector.extract_strided_slice %6 {offsets = [0, 2, 0], sizes = [1, 1, 128], strides = [1, 1, 1]} : vector<3x3x128xf32> to vector<1x1x128xf32>
    %29 = vector.shape_cast %28 : vector<1x1x128xf32> to vector<128xf32>
    %30 = vector.shape_cast %29 : vector<128xf32> to vector<1x1x128xf32>
    %31 = vector.broadcast %30 : vector<1x1x128xf32> to vector<8x16x128xf32>
    %32 = arith.mulf %27, %31 : vector<8x16x128xf32>
    %33 = arith.addf %26, %32 : vector<8x16x128xf32>
    %34 = vector.extract_strided_slice %5 {offsets = [1, 0, 0], sizes = [8, 16, 128], strides = [1, 1, 1]} : vector<10x24x128xf32> to vector<8x16x128xf32>
    %35 = vector.extract_strided_slice %6 {offsets = [1, 0, 0], sizes = [1, 1, 128], strides = [1, 1, 1]} : vector<3x3x128xf32> to vector<1x1x128xf32>
    %36 = vector.shape_cast %35 : vector<1x1x128xf32> to vector<128xf32>
    %37 = vector.shape_cast %36 : vector<128xf32> to vector<1x1x128xf32>
    %38 = vector.broadcast %37 : vector<1x1x128xf32> to vector<8x16x128xf32>
    %39 = arith.mulf %34, %38 : vector<8x16x128xf32>
    %40 = arith.addf %33, %39 : vector<8x16x128xf32>
    %41 = vector.extract_strided_slice %7 {offsets = [1, 0, 0], sizes = [8, 16, 128], strides = [1, 1, 1]} : vector<10x24x128xf32> to vector<8x16x128xf32>
    %42 = vector.extract_strided_slice %6 {offsets = [1, 1, 0], sizes = [1, 1, 128], strides = [1, 1, 1]} : vector<3x3x128xf32> to vector<1x1x128xf32>
    %43 = vector.shape_cast %42 : vector<1x1x128xf32> to vector<128xf32>
    %44 = vector.shape_cast %43 : vector<128xf32> to vector<1x1x128xf32>
    %45 = vector.broadcast %44 : vector<1x1x128xf32> to vector<8x16x128xf32>
    %46 = arith.mulf %41, %45 : vector<8x16x128xf32>
    %47 = arith.addf %40, %46 : vector<8x16x128xf32>
    %48 = vector.extract_strided_slice %8 {offsets = [1, 0, 0], sizes = [8, 16, 128], strides = [1, 1, 1]} : vector<10x24x128xf32> to vector<8x16x128xf32>
    %49 = vector.extract_strided_slice %6 {offsets = [1, 2, 0], sizes = [1, 1, 128], strides = [1, 1, 1]} : vector<3x3x128xf32> to vector<1x1x128xf32>
    %50 = vector.shape_cast %49 : vector<1x1x128xf32> to vector<128xf32>
    %51 = vector.shape_cast %50 : vector<128xf32> to vector<1x1x128xf32>
    %52 = vector.broadcast %51 : vector<1x1x128xf32> to vector<8x16x128xf32>
    %53 = arith.mulf %48, %52 : vector<8x16x128xf32>
    %54 = arith.addf %47, %53 : vector<8x16x128xf32>
    %55 = vector.extract_strided_slice %5 {offsets = [2, 0, 0], sizes = [8, 16, 128], strides = [1, 1, 1]} : vector<10x24x128xf32> to vector<8x16x128xf32>
    %56 = vector.extract_strided_slice %6 {offsets = [2, 0, 0], sizes = [1, 1, 128], strides = [1, 1, 1]} : vector<3x3x128xf32> to vector<1x1x128xf32>
    %57 = vector.shape_cast %56 : vector<1x1x128xf32> to vector<128xf32>
    %58 = vector.shape_cast %57 : vector<128xf32> to vector<1x1x128xf32>
    %59 = vector.broadcast %58 : vector<1x1x128xf32> to vector<8x16x128xf32>
    %60 = arith.mulf %55, %59 : vector<8x16x128xf32>
    %61 = arith.addf %54, %60 : vector<8x16x128xf32>
    %62 = vector.extract_strided_slice %7 {offsets = [2, 0, 0], sizes = [8, 16, 128], strides = [1, 1, 1]} : vector<10x24x128xf32> to vector<8x16x128xf32>
    %63 = vector.extract_strided_slice %6 {offsets = [2, 1, 0], sizes = [1, 1, 128], strides = [1, 1, 1]} : vector<3x3x128xf32> to vector<1x1x128xf32>
    %64 = vector.shape_cast %63 : vector<1x1x128xf32> to vector<128xf32>
    %65 = vector.shape_cast %64 : vector<128xf32> to vector<1x1x128xf32>
    %66 = vector.broadcast %65 : vector<1x1x128xf32> to vector<8x16x128xf32>
    %67 = arith.mulf %62, %66 : vector<8x16x128xf32>
    %68 = arith.addf %61, %67 : vector<8x16x128xf32>
    %69 = vector.extract_strided_slice %8 {offsets = [2, 0, 0], sizes = [8, 16, 128], strides = [1, 1, 1]} : vector<10x24x128xf32> to vector<8x16x128xf32>
    %70 = vector.extract_strided_slice %6 {offsets = [2, 2, 0], sizes = [1, 1, 128], strides = [1, 1, 1]} : vector<3x3x128xf32> to vector<1x1x128xf32>
    %71 = vector.shape_cast %70 : vector<1x1x128xf32> to vector<128xf32>
    %72 = vector.shape_cast %71 : vector<128xf32> to vector<1x1x128xf32>
    %73 = vector.broadcast %72 : vector<1x1x128xf32> to vector<8x16x128xf32>
    %74 = arith.mulf %69, %73 : vector<8x16x128xf32>
    %75 = arith.addf %68, %74 : vector<8x16x128xf32>
    %cst = arith.constant 0.000000e+00 : f32
    %cst_7 = arith.constant 6.000000e+00 : f32
    %76 = vector.broadcast %cst : f32 to vector<8x16x128xf32>
    %77 = arith.maximumf %76, %75 : vector<8x16x128xf32>
    %78 = vector.broadcast %cst_7 : f32 to vector<8x16x128xf32>
    %79 = arith.minimumf %78, %77 : vector<8x16x128xf32>
    %80 = vector.shape_cast %79 : vector<8x16x128xf32> to vector<128x128xf32>
    %81 = arith.truncf %80 : vector<128x128xf32> to vector<128x128xbf16>
    %c0_8 = arith.constant 0 : index
    %c0_9 = arith.constant 0 : index
    %82 = vector.load %arg5[%c0_8, %c0_9] : memref<128x128xbf16, #tpu.memory_space<vmem>>, vector<128x128xbf16>
    %cst_10 = arith.constant dense<0.000000e+00> : vector<128x128xf32>
    %83 = tpu.matmul %81, %82, %cst_10 {dimension_numbers = #tpu.dot_dimension_numbers<[1], [0], [0], [1], [0, 0, 1, 1], [], []>} : vector<128x128xbf16>, vector<128x128xbf16>, vector<128x128xf32> -> vector<128x128xf32>
    %c0_11 = arith.constant 0 : index
    %c0_12 = arith.constant 0 : index
    %84 = vector.load %arg6[%c0_11, %c0_12] : memref<1x128xf32, #tpu.memory_space<vmem>>, vector<1x128xf32>
    %85 = vector.shape_cast %84 : vector<1x128xf32> to vector<128xf32>
    %86 = vector.shape_cast %85 : vector<128xf32> to vector<1x128xf32>
    %87 = vector.broadcast %86 : vector<1x128xf32> to vector<128x128xf32>
    %88 = arith.addf %83, %87 : vector<128x128xf32>
    %c0_13 = arith.constant 0 : index
    %c0_14 = arith.constant 0 : index
    %c0_15 = arith.constant 0 : index
    %89 = vector.load %arg7[%c0_13, %c0_14, %c0_15] : memref<1x128x128xf32, #tpu.memory_space<vmem>>, vector<1x128x128xf32>
    %90 = vector.shape_cast %89 : vector<1x128x128xf32> to vector<128x128xf32>
    %91 = vector.shape_cast %88 : vector<128x128xf32> to vector<1x128x128xf32>
    tpu.vector_store %arg7[%c0_13, %c0_14, %c0_15], %91 {strides = array<i32>} : memref<1x128x128xf32, #tpu.memory_space<vmem>>, vector<1x128x128xf32>,
    return
  }
  func.func @transform_0(%arg0: i32, %arg1: i32) -> (i32, i32, i32, i32) {
    %c0_i32 = arith.constant 0 : i32
    %c0_i32_0 = arith.constant 0 : i32
    %c0_i32_1 = arith.constant 0 : i32
    %c0_i32_2 = arith.constant 0 : i32
    return %arg0, %c0_i32, %c0_i32_0, %c0_i32_1 : i32, i32, i32, i32
  }
  func.func @transform_1(%arg0: i32, %arg1: i32) -> (i32, i32, i32) {
    %c0_i32 = arith.constant 0 : i32
    %c0_i32_0 = arith.constant 0 : i32
    %c0_i32_1 = arith.constant 0 : i32
    %c0_i32_2 = arith.constant 0 : i32
    return %c0_i32, %c0_i32_0, %c0_i32_1 : i32, i32, i32
  }
  func.func @transform_2(%arg0: i32, %arg1: i32) -> (i32, i32) {
    %c0_i32 = arith.constant 0 : i32
    %c0_i32_0 = arith.constant 0 : i32
    %c0_i32_1 = arith.constant 0 : i32
    return %c0_i32, %c0_i32_0 : i32, i32
  }
  func.func @transform_3(%arg0: i32, %arg1: i32) -> (i32, i32) {
    %c0_i32 = arith.constant 0 : i32
    %c0_i32_0 = arith.constant 0 : i32
    %c0_i32_1 = arith.constant 0 : i32
    return %c0_i32, %c0_i32_0 : i32, i32
  }
  func.func @transform_4(%arg0: i32, %arg1: i32) -> (i32, i32) {
    %c0_i32 = arith.constant 0 : i32
    %c0_i32_0 = arith.constant 0 : i32
    %c0_i32_1 = arith.constant 0 : i32
    return %c0_i32, %c0_i32_0 : i32, i32
  }
  func.func @transform_5(%arg0: i32, %arg1: i32) -> (i32, i32, i32) {
    %c0_i32 = arith.constant 0 : i32
    %c0_i32_0 = arith.constant 0 : i32
    return %arg0, %arg1, %c0_i32 : i32, i32, i32
  }
}

module attributes {stable_mosaic.version = 11 : i64} {
  func.func @ssd_head_kernel(%arg0: i32, %arg1: i32, %arg2: memref<1x18x24x128xbf16, #tpu.memory_space<vmem>>, %arg3: memref<3x3x128xf32, #tpu.memory_space<vmem>>, %arg4: memref<1x128xf32, #tpu.memory_space<vmem>>, %arg5: memref<128x128xbf16, #tpu.memory_space<vmem>>, %arg6: memref<1x128xf32, #tpu.memory_space<vmem>>, %arg7: memref<1x128x128xf32, #tpu.memory_space<vmem>>) attributes {dimension_semantics = [#tpu.dimension_semantics<parallel>, #tpu.dimension_semantics<parallel>], iteration_bounds = array<i64: 2, 2>, scalar_prefetch = 0 : i64, scratch_operands = 0 : i64, tpu.core_type = #tpu.core_type<tc>, window_params = [{transform_indices = @transform_0, window_bounds = array<i64: 1, 18, 24, 128>}, {pipeline_mode = #tpu.pipeline_mode<synchronous>, transform_indices = @transform_1, window_bounds = array<i64: 3, 3, 128>}, {pipeline_mode = #tpu.pipeline_mode<synchronous>, transform_indices = @transform_2, window_bounds = array<i64: 1, 128>}, {pipeline_mode = #tpu.pipeline_mode<synchronous>, transform_indices = @transform_3, window_bounds = array<i64: 128, 128>}, {pipeline_mode = #tpu.pipeline_mode<synchronous>, transform_indices = @transform_4, window_bounds = array<i64: 1, 128>}, {transform_indices = @transform_5, window_bounds = array<i64: 1, 128, 128>}]} {
    %c8_i32 = arith.constant 8 : i32
    %0 = arith.muli %arg1, %c8_i32 : i32
    %1 = tpu.assume_multiple %0, 8 : i32
    %c0 = arith.constant 0 : index
    %2 = arith.index_cast %1 : i32 to index
    %c0_0 = arith.constant 0 : index
    %c0_1 = arith.constant 0 : index
    %3 = vector.load %arg2[%c0, %2, %c0_0, %c0_1] : memref<1x18x24x128xbf16, #tpu.memory_space<vmem>>, vector<1x10x24x128xbf16>
    %4 = vector.shape_cast %3 : vector<1x10x24x128xbf16> to vector<10x24x128xbf16>
    %5 = arith.extf %4 : vector<10x24x128xbf16> to vector<10x24x128xf32>
    %c0_2 = arith.constant 0 : index
    %c0_3 = arith.constant 0 : index
    %c0_4 = arith.constant 0 : index
    %6 = vector.load %arg3[%c0_2, %c0_3, %c0_4] : memref<3x3x128xf32, #tpu.memory_space<vmem>>, vector<3x3x128xf32>
    %c23_i32 = arith.constant 23 : i32
    %7 = tpu.dynamic_rotate %5 by %c23_i32 dim 1 : vector<10x24x128xf32>, i32 -> vector<10x24x128xf32>
    %c22_i32 = arith.constant 22 : i32
    %8 = tpu.dynamic_rotate %5 by %c22_i32 dim 1 : vector<10x24x128xf32>, i32 -> vector<10x24x128xf32>
    %9 = vector.extract_strided_slice %5 {offsets = [0, 0, 0], sizes = [8, 16, 128], strides = [1, 1, 1]} : vector<10x24x128xf32> to vector<8x16x128xf32>
    %10 = vector.extract_strided_slice %6 {offsets = [0, 0, 0], sizes = [1, 1, 128], strides = [1, 1, 1]} : vector<3x3x128xf32> to vector<1x1x128xf32>
    %11 = vector.shape_cast %10 : vector<1x1x128xf32> to vector<128xf32>
    %12 = vector.shape_cast %11 : vector<128xf32> to vector<1x1x128xf32>
    %13 = vector.broadcast %12 : vector<1x1x128xf32> to vector<8x16x128xf32>
    %14 = arith.mulf %9, %13 : vector<8x16x128xf32>
    %c0_5 = arith.constant 0 : index
    %c0_6 = arith.constant 0 : index
    %15 = vector.load %arg4[%c0_5, %c0_6] : memref<1x128xf32, #tpu.memory_space<vmem>>, vector<1x128xf32>
    %16 = vector.shape_cast %15 : vector<1x128xf32> to vector<128xf32>
    %17 = vector.shape_cast %16 : vector<128xf32> to vector<1x1x128xf32>
    %18 = vector.broadcast %17 : vector<1x1x128xf32> to vector<8x16x128xf32>
    %19 = arith.addf %14, %18 : vector<8x16x128xf32>
    %20 = vector.extract_strided_slice %7 {offsets = [0, 0, 0], sizes = [8, 16, 128], strides = [1, 1, 1]} : vector<10x24x128xf32> to vector<8x16x128xf32>
    %21 = vector.extract_strided_slice %6 {offsets = [0, 1, 0], sizes = [1, 1, 128], strides = [1, 1, 1]} : vector<3x3x128xf32> to vector<1x1x128xf32>
    %22 = vector.shape_cast %21 : vector<1x1x128xf32> to vector<128xf32>
    %23 = vector.shape_cast %22 : vector<128xf32> to vector<1x1x128xf32>
    %24 = vector.broadcast %23 : vector<1x1x128xf32> to vector<8x16x128xf32>
    %25 = arith.mulf %20, %24 : vector<8x16x128xf32>
    %26 = arith.addf %19, %25 : vector<8x16x128xf32>
    %27 = vector.extract_strided_slice %8 {offsets = [0, 0, 0], sizes = [8, 16, 128], strides = [1, 1, 1]} : vector<10x24x128xf32> to vector<8x16x128xf32>
    %28 = vector.extract_strided_slice %6 {offsets = [0, 2, 0], sizes = [1, 1, 128], strides = [1, 1, 1]} : vector<3x3x128xf32> to vector<1x1x128xf32>
    %29 = vector.shape_cast %28 : vector<1x1x128xf32> to vector<128xf32>
    %30 = vector.shape_cast %29 : vector<128xf32> to vector<1x1x128xf32>
    %31 = vector.broadcast %30 : vector<1x1x128xf32> to vector<8x16x128xf32>
    %32 = arith.mulf %27, %31 : vector<8x16x128xf32>
    %33 = arith.addf %26, %32 : vector<8x16x128xf32>
    %34 = vector.extract_strided_slice %5 {offsets = [1, 0, 0], sizes = [8, 16, 128], strides = [1, 1, 1]} : vector<10x24x128xf32> to vector<8x16x128xf32>
    %35 = vector.extract_strided_slice %6 {offsets = [1, 0, 0], sizes = [1, 1, 128], strides = [1, 1, 1]} : vector<3x3x128xf32> to vector<1x1x128xf32>
    %36 = vector.shape_cast %35 : vector<1x1x128xf32> to vector<128xf32>
    %37 = vector.shape_cast %36 : vector<128xf32> to vector<1x1x128xf32>
    %38 = vector.broadcast %37 : vector<1x1x128xf32> to vector<8x16x128xf32>
    %39 = arith.mulf %34, %38 : vector<8x16x128xf32>
    %40 = arith.addf %33, %39 : vector<8x16x128xf32>
    %41 = vector.extract_strided_slice %7 {offsets = [1, 0, 0], sizes = [8, 16, 128], strides = [1, 1, 1]} : vector<10x24x128xf32> to vector<8x16x128xf32>
    %42 = vector.extract_strided_slice %6 {offsets = [1, 1, 0], sizes = [1, 1, 128], strides = [1, 1, 1]} : vector<3x3x128xf32> to vector<1x1x128xf32>
    %43 = vector.shape_cast %42 : vector<1x1x128xf32> to vector<128xf32>
    %44 = vector.shape_cast %43 : vector<128xf32> to vector<1x1x128xf32>
    %45 = vector.broadcast %44 : vector<1x1x128xf32> to vector<8x16x128xf32>
    %46 = arith.mulf %41, %45 : vector<8x16x128xf32>
    %47 = arith.addf %40, %46 : vector<8x16x128xf32>
    %48 = vector.extract_strided_slice %8 {offsets = [1, 0, 0], sizes = [8, 16, 128], strides = [1, 1, 1]} : vector<10x24x128xf32> to vector<8x16x128xf32>
    %49 = vector.extract_strided_slice %6 {offsets = [1, 2, 0], sizes = [1, 1, 128], strides = [1, 1, 1]} : vector<3x3x128xf32> to vector<1x1x128xf32>
    %50 = vector.shape_cast %49 : vector<1x1x128xf32> to vector<128xf32>
    %51 = vector.shape_cast %50 : vector<128xf32> to vector<1x1x128xf32>
    %52 = vector.broadcast %51 : vector<1x1x128xf32> to vector<8x16x128xf32>
    %53 = arith.mulf %48, %52 : vector<8x16x128xf32>
    %54 = arith.addf %47, %53 : vector<8x16x128xf32>
    %55 = vector.extract_strided_slice %5 {offsets = [2, 0, 0], sizes = [8, 16, 128], strides = [1, 1, 1]} : vector<10x24x128xf32> to vector<8x16x128xf32>
    %56 = vector.extract_strided_slice %6 {offsets = [2, 0, 0], sizes = [1, 1, 128], strides = [1, 1, 1]} : vector<3x3x128xf32> to vector<1x1x128xf32>
    %57 = vector.shape_cast %56 : vector<1x1x128xf32> to vector<128xf32>
    %58 = vector.shape_cast %57 : vector<128xf32> to vector<1x1x128xf32>
    %59 = vector.broadcast %58 : vector<1x1x128xf32> to vector<8x16x128xf32>
    %60 = arith.mulf %55, %59 : vector<8x16x128xf32>
    %61 = arith.addf %54, %60 : vector<8x16x128xf32>
    %62 = vector.extract_strided_slice %7 {offsets = [2, 0, 0], sizes = [8, 16, 128], strides = [1, 1, 1]} : vector<10x24x128xf32> to vector<8x16x128xf32>
    %63 = vector.extract_strided_slice %6 {offsets = [2, 1, 0], sizes = [1, 1, 128], strides = [1, 1, 1]} : vector<3x3x128xf32> to vector<1x1x128xf32>
    %64 = vector.shape_cast %63 : vector<1x1x128xf32> to vector<128xf32>
    %65 = vector.shape_cast %64 : vector<128xf32> to vector<1x1x128xf32>
    %66 = vector.broadcast %65 : vector<1x1x128xf32> to vector<8x16x128xf32>
    %67 = arith.mulf %62, %66 : vector<8x16x128xf32>
    %68 = arith.addf %61, %67 : vector<8x16x128xf32>
    %69 = vector.extract_strided_slice %8 {offsets = [2, 0, 0], sizes = [8, 16, 128], strides = [1, 1, 1]} : vector<10x24x128xf32> to vector<8x16x128xf32>
    %70 = vector.extract_strided_slice %6 {offsets = [2, 2, 0], sizes = [1, 1, 128], strides = [1, 1, 1]} : vector<3x3x128xf32> to vector<1x1x128xf32>
    %71 = vector.shape_cast %70 : vector<1x1x128xf32> to vector<128xf32>
    %72 = vector.shape_cast %71 : vector<128xf32> to vector<1x1x128xf32>
    %73 = vector.broadcast %72 : vector<1x1x128xf32> to vector<8x16x128xf32>
    %74 = arith.mulf %69, %73 : vector<8x16x128xf32>
    %75 = arith.addf %68, %74 : vector<8x16x128xf32>
    %cst = arith.constant 0.000000e+00 : f32
    %cst_7 = arith.constant 6.000000e+00 : f32
    %76 = vector.broadcast %cst : f32 to vector<8x16x128xf32>
    %77 = arith.maximumf %76, %75 : vector<8x16x128xf32>
    %78 = vector.broadcast %cst_7 : f32 to vector<8x16x128xf32>
    %79 = arith.minimumf %78, %77 : vector<8x16x128xf32>
    %80 = vector.shape_cast %79 : vector<8x16x128xf32> to vector<128x128xf32>
    %81 = arith.truncf %80 : vector<128x128xf32> to vector<128x128xbf16>
    %c0_8 = arith.constant 0 : index
    %c0_9 = arith.constant 0 : index
    %82 = vector.load %arg5[%c0_8, %c0_9] : memref<128x128xbf16, #tpu.memory_space<vmem>>, vector<128x128xbf16>
    %cst_10 = arith.constant dense<0.000000e+00> : vector<128x128xf32>
    %83 = tpu.matmul %81, %82, %cst_10 {dimension_numbers = #tpu.dot_dimension_numbers<[1], [0], [0], [1], [0, 0, 1, 1], [], []>} : vector<128x128xbf16>, vector<128x128xbf16>, vector<128x128xf32> -> vector<128x128xf32>
    %c0_11 = arith.constant 0 : index
    %c0_12 = arith.constant 0 : index
    %84 = vector.load %arg6[%c0_11, %c0_12] : memref<1x128xf32, #tpu.memory_space<vmem>>, vector<1x128xf32>
    %85 = vector.shape_cast %84 : vector<1x128xf32> to vector<128xf32>
    %86 = vector.shape_cast %85 : vector<128xf32> to vector<1x128xf32>
    %87 = vector.broadcast %86 : vector<1x128xf32> to vector<128x128xf32>
    %88 = arith.addf %83, %87 : vector<128x128xf32>
    %c0_13 = arith.constant 0 : index
    %c0_14 = arith.constant 0 : index
    %c0_15 = arith.constant 0 : index
    %89 = vector.load %arg7[%c0_13, %c0_14, %c0_15] : memref<1x128x128xf32, #tpu.memory_space<vmem>>, vector<1x128x128xf32>
    %90 = vector.shape_cast %89 : vector<1x128x128xf32> to vector<128x128xf32>
    %91 = vector.shape_cast %88 : vector<128x128xf32> to vector<1x128x128xf32>
    tpu.vector_store %arg7[%c0_13, %c0_14, %c0_15], %91 {strides = array<i32>} : memref<1x128x128xf32, #tpu.memory_space<vmem>>, vector<1x128x128xf32>,
    return
  }
  func.func @transform_0(%arg0: i32, %arg1: i32) -> (i32, i32, i32, i32) {
    %c0_i32 = arith.constant 0 : i32
    %c0_i32_0 = arith.constant 0 : i32
    %c0_i32_1 = arith.constant 0 : i32
    %c0_i32_2 = arith.constant 0 : i32
    return %arg0, %c0_i32, %c0_i32_0, %c0_i32_1 : i32, i32, i32, i32
  }
  func.func @transform_1(%arg0: i32, %arg1: i32) -> (i32, i32, i32) {
    %c0_i32 = arith.constant 0 : i32
    %c0_i32_0 = arith.constant 0 : i32
    %c0_i32_1 = arith.constant 0 : i32
    %c0_i32_2 = arith.constant 0 : i32
    return %c0_i32, %c0_i32_0, %c0_i32_1 : i32, i32, i32
  }
  func.func @transform_2(%arg0: i32, %arg1: i32) -> (i32, i32) {
    %c0_i32 = arith.constant 0 : i32
    %c0_i32_0 = arith.constant 0 : i32
    %c0_i32_1 = arith.constant 0 : i32
    return %c0_i32, %c0_i32_0 : i32, i32
  }
  func.func @transform_3(%arg0: i32, %arg1: i32) -> (i32, i32) {
    %c0_i32 = arith.constant 0 : i32
    %c0_i32_0 = arith.constant 0 : i32
    %c0_i32_1 = arith.constant 0 : i32
    return %c0_i32, %c0_i32_0 : i32, i32
  }
  func.func @transform_4(%arg0: i32, %arg1: i32) -> (i32, i32) {
    %c0_i32 = arith.constant 0 : i32
    %c0_i32_0 = arith.constant 0 : i32
    %c0_i32_1 = arith.constant 0 : i32
    return %c0_i32, %c0_i32_0 : i32, i32
  }
  func.func @transform_5(%arg0: i32, %arg1: i32) -> (i32, i32, i32) {
    %c0_i32 = arith.constant 0 : i32
    %c0_i32_0 = arith.constant 0 : i32
    return %arg0, %arg1, %c0_i32 : i32, i32, i32
  }
}

</mosaic_0001>

<llo_original>
// kernel: tpu_custom_call.1
$region0: #{tpu_custom_call.1}
  #allocation0 [shape = 'u32[]', space=smem, size = 0x4, offset = 0x4, fixed_abs, tag = 'smem constant byte address 0x4 - core index']
  #allocation1 [shape = 'u32[72,128]{1,0:T(1,128)}', space=vmem, size = 0x9000, scoped, tag = 'internal scratch']
  %s0 = inlined_call_operand.hbm [shape: bf16[2,18,24,128], index: 0, kind: input, shape index: {}]
  %s1 = inlined_call_operand.hbm [shape: f32[3,3,128], index: 1, kind: input, shape index: {}]
  %s2 = inlined_call_operand.vmem [shape: f32[1,128], index: 2, kind: input, shape index: {}]
  %s3 = inlined_call_operand.hbm [shape: bf16[128,128], index: 3, kind: input, shape index: {}]
  %s4 = inlined_call_operand.vmem [shape: f32[1,128], index: 4, kind: input, shape index: {}]
  %s5 = inlined_call_operand.hbm [shape: f32[2,256,128], index: 5, kind: output, shape index: {}]
  %s6 = sld [smem:[#allocation0]]
  $region65: #{tpu_custom_call.1} parent=0
    _
  %s8 = ssub.s32 1, %s6
  %s9 = scalar_select 0, %s8, %s6
  $region1: #{tpu_custom_call.1} parent=0
    #allocation2 [shape = 'u8[110592]{0}', space=vmem, size = 0x1b000, scoped, tag = 'input window, operand 0, single buffered']
    #allocation3 [shape = 's32[2]{0}', space=sflag, size = 0x8, scoped, tag = 'scoped memory for tpu_custom_call.1']
    #allocation4 [shape = 's32[2]{0}', space=sflag, size = 0x8, scoped, tag = 'scoped memory for tpu_custom_call.1']
    #allocation5 [shape = 'u8[6144]{0}', space=vmem, size = 0x1800, scoped, tag = 'input window, operand 1, single buffered']
    #allocation6 [shape = 's32[1]{0}', space=sflag, size = 0x4, scoped, tag = 'scoped memory for tpu_custom_call.1']
    #allocation7 [shape = 'u8[32768]{0}', space=vmem, size = 0x8000, scoped, tag = 'input window, operand 3, single buffered']
    #allocation8 [shape = 'u8[131072]{0}', space=vmem, size = 0x20000, scoped, tag = 'output window, operand 0']
    %10 = vsyncpa [#allocation3], 0
    %11 = vsyncpa [#allocation6], 0
    %12 = vsyncpa [#allocation4], 0
    %s13 = scalar_lea.sflag [#allocation4], 1
    %14 = vsyncpa %s13, 0
    loop: start=0, step=1, limit=6
    $region2: #{tpu_custom_call.1} parent=1 // loop_pre_header
      _
    $region3: #{tpu_custom_call.1} parent=1 // loop_header
      %s16 = sphi 0, %s20
      %p17 = scmp.ge.s32.totalorder %s16, 6
      %s23 = sphi 0, %s35
      %s24 = sphi 0, %s31
      %s25 = sphi 0, %s23
      %s26 = sphi 0, %s24
      %s27 = sphi 0, %s25
      %s28 = sphi 0, %s26
      %s38 = sphi 0, %s40
      %s41 = sphi 0, %s38
      %s42 = sphi 0, %s41
      %s58 = sphi 0, %s42
      %s62 = sphi 0, %s62
      %s64 = sphi 0, %s62
      %s65 = sphi 0, %s64
      %s79 = sphi 0, %s65
      %s83 = sphi 0, %s83
      %s85 = sphi 0, %s83
      %s86 = sphi 0, %s85
      %s100 = sphi 0, %s86
      %s104 = sphi 0, %s104
      %s106 = sphi 0, %s104
      %s107 = sphi 0, %s106
      %s121 = sphi 0, %s107
      %s125 = sphi 0, %s125
      %s127 = sphi 0, %s125
      %s128 = sphi 0, %s127
      %s142 = sphi 0, %s128
      %s150 = sphi 0, %s152
      %s153 = sphi 0, %s150
      %s154 = sphi 0, %s153
      %s170 = sphi 0, %s154
    $region4: #{tpu_custom_call.1} parent=1 // loop_header_branch
      %19 = sbr.rel (%p17) target = $region8
    $region5: #{tpu_custom_call.1} parent=1 // loop_body
      %s21 = ssub.s32 %s16, 1
      %s22 = ssub.s32 %s16, 2
      %s29 = sadd.s32 1, %s24
      %p30 = scmp.ge.s32.totalorder %s29, 2
      %s31 = scalar_select %p30, 0, %s29
      %s32 = sadd.s32 1, %s23
      %s33 = scalar_select %p30, %s32, %s23
      %p34 = scmp.ge.s32.totalorder %s33, 2
      %s35 = scalar_select %p34, 0, %s33
      %s36 = ssub.s32 %s23, %s35
      %p37 = scmp.eq.s32.totalorder %s36, 0
      %s39 = sadd.s32 %s38, 1
      %s40 = scalar_select %p37, %s38, %s39
      %p43 = pneg %p37
      %p44 = scmp.eq.s32.totalorder %s16, 3
      %p45 = por %p43, %p44
      %p46 = scmp.ne.s32.totalorder %s38, %s41
      %p47 = scmp.eq.s32.totalorder %s16, 0
      %p48 = por %p46, %p47
      %p49 = scmp.ne.s32.totalorder %s38, %s41
      %p50 = scmp.eq.s32.totalorder %s21, 3
      %p51 = por %p49, %p50
      %p52 = scmp.ne.s32.totalorder %s41, %s42
      %p53 = scmp.eq.s32.totalorder %s21, 0
      %p54 = por %p52, %p53
      %p55 = scmp.ne.s32.totalorder %s41, %s42
      %p56 = scmp.eq.s32.totalorder %s22, 3
      %p57 = por %p55, %p56
      %p59 = scmp.ne.s32.totalorder %s42, %s58
      %p60 = scmp.eq.s32.totalorder %s22, 0
      %p61 = por %p59, %p60
      %s63 = sadd.s32 %s62, 1
      %p66 = scmp.eq.s32.totalorder %s16, 3
      %p67 = scmp.ne.s32.totalorder %s62, %s64
      %p68 = scmp.eq.s32.totalorder %s16, 0
      %p69 = por %p67, %p68
      %p70 = scmp.ne.s32.totalorder %s62, %s64
      %p71 = scmp.eq.s32.totalorder %s21, 3
      %p72 = por %p70, %p71
      %p73 = scmp.ne.s32.totalorder %s64, %s65
      %p74 = scmp.eq.s32.totalorder %s21, 0
      %p75 = por %p73, %p74
      %p76 = scmp.ne.s32.totalorder %s64, %s65
      %p77 = scmp.eq.s32.totalorder %s22, 3
      %p78 = por %p76, %p77
      %p80 = scmp.ne.s32.totalorder %s65, %s79
      %p81 = scmp.eq.s32.totalorder %s22, 0
      %p82 = por %p80, %p81
      %s84 = sadd.s32 %s83, 1
      %p87 = scmp.eq.s32.totalorder %s16, 3
      %p88 = scmp.ne.s32.totalorder %s83, %s85
      %p89 = scmp.eq.s32.totalorder %s16, 0
      %p90 = por %p88, %p89
      %p91 = scmp.ne.s32.totalorder %s83, %s85
      %p92 = scmp.eq.s32.totalorder %s21, 3
      %p93 = por %p91, %p92
      %p94 = scmp.ne.s32.totalorder %s85, %s86
      %p95 = scmp.eq.s32.totalorder %s21, 0
      %p96 = por %p94, %p95
      %p97 = scmp.ne.s32.totalorder %s85, %s86
      %p98 = scmp.eq.s32.totalorder %s22, 3
      %p99 = por %p97, %p98
      %p101 = scmp.ne.s32.totalorder %s86, %s100
      %p102 = scmp.eq.s32.totalorder %s22, 0
      %p103 = por %p101, %p102
      %s105 = sadd.s32 %s104, 1
      %p108 = scmp.eq.s32.totalorder %s16, 3
      %p109 = scmp.ne.s32.totalorder %s104, %s106
      %p110 = scmp.eq.s32.totalorder %s16, 0
      %p111 = por %p109, %p110
      %p112 = scmp.ne.s32.totalorder %s104, %s106
      %p113 = scmp.eq.s32.totalorder %s21, 3
      %p114 = por %p112, %p113
      %p115 = scmp.ne.s32.totalorder %s106, %s107
      %p116 = scmp.eq.s32.totalorder %s21, 0
      %p117 = por %p115, %p116
      %p118 = scmp.ne.s32.totalorder %s106, %s107
      %p119 = scmp.eq.s32.totalorder %s22, 3
      %p120 = por %p118, %p119
      %p122 = scmp.ne.s32.totalorder %s107, %s121
      %p123 = scmp.eq.s32.totalorder %s22, 0
      %p124 = por %p122, %p123
      %s126 = sadd.s32 %s125, 1
      %p129 = scmp.eq.s32.totalorder %s16, 3
      %p130 = scmp.ne.s32.totalorder %s125, %s127
      %p131 = scmp.eq.s32.totalorder %s16, 0
      %p132 = por %p130, %p131
      %p133 = scmp.ne.s32.totalorder %s125, %s127
      %p134 = scmp.eq.s32.totalorder %s21, 3
      %p135 = por %p133, %p134
      %p136 = scmp.ne.s32.totalorder %s127, %s128
      %p137 = scmp.eq.s32.totalorder %s21, 0
      %p138 = por %p136, %p137
      %p139 = scmp.ne.s32.totalorder %s127, %s128
      %p140 = scmp.eq.s32.totalorder %s22, 3
      %p141 = por %p139, %p140
      %p143 = scmp.ne.s32.totalorder %s128, %s142
      %p144 = scmp.eq.s32.totalorder %s22, 0
      %p145 = por %p143, %p144
      %s146 = ssub.s32 %s23, %s35
      %s147 = ssub.s32 %s24, %s31
      %s148 = sor.u32 %s146, %s147
      %p149 = scmp.eq.s32.totalorder %s148, 0
      %s151 = sadd.s32 %s150, 1
      %s152 = scalar_select %p149, %s150, %s151
      %p155 = pneg %p149
      %p156 = scmp.eq.s32.totalorder %s16, 3
      %p157 = por %p155, %p156
      %p158 = scmp.ne.s32.totalorder %s150, %s153
      %p159 = scmp.eq.s32.totalorder %s16, 0
      %p160 = por %p158, %p159
      %p161 = scmp.ne.s32.totalorder %s150, %s153
      %p162 = scmp.eq.s32.totalorder %s21, 3
      %p163 = por %p161, %p162
      %p164 = scmp.ne.s32.totalorder %s153, %s154
      %p165 = scmp.eq.s32.totalorder %s21, 0
      %p166 = por %p164, %p165
      %p167 = scmp.ne.s32.totalorder %s153, %s154
      %p168 = scmp.eq.s32.totalorder %s22, 3
      %p169 = por %p167, %p168
      %p171 = scmp.ne.s32.totalorder %s154, %s170
      %p172 = scmp.eq.s32.totalorder %s22, 0
      %p173 = por %p171, %p172
      %p174 = scmp.le.s32.totalorder 1, %s16
      %p175 = scmp.lt.s32.totalorder %s16, 5
      %p176 = pnand %p174, %p175
      %p177 = pneg %p176
      // Predicated region
      $region9: #{tpu_custom_call.1} parent=5 // pred_check
        _
      $region10: #{tpu_custom_call.1} parent=5 // pred_check_branch
        %179 = sbr.rel (%p176) target = $region12
      $region11: #{tpu_custom_call.1} parent=5 // pred_region
        %s180 = ssub.s32 %s16, 1
        // Predicated region
        $region13: #{tpu_custom_call.1} parent=11 // pred_check
          %p181 = pneg %p54
        $region14: #{tpu_custom_call.1} parent=11 // pred_check_branch
          %183 = sbr.rel (%p181) target = $region16
        $region15: #{tpu_custom_call.1} parent=11 // pred_region
          %185 = vsyncadd [#allocation3], 0
          %s186 = smul.addr %s25, 54
          %s187 = smul.addr %s186, 4
          %s188 = scalar_lea.hbm %s0, %s187
          %s189 = sshll.u32 %s188, 4
          %s190 = int_to_ptr.hbm [resolvable:$true] %s189
          %s191 = sshll.u32 [#allocation2], 4
          %s192 = int_to_ptr.vmem [resolvable:$true] %s191
          %197 = dma.hbm_to_vmem [thread:$0]  %s190, 3456, %s192, [#allocation3], 64, 64, 4
        $region16: #{tpu_custom_call.1} parent=11 // pred_fallthru
          _
        // Predicated region
        $region17: #{tpu_custom_call.1} parent=11 // pred_check
          %p198 = pneg %p75
        $region18: #{tpu_custom_call.1} parent=11 // pred_check_branch
          %200 = sbr.rel (%p198) target = $region20
        $region19: #{tpu_custom_call.1} parent=11 // pred_region
          %202 = vsyncadd [#allocation6], 0
          %s203 = sshll.u32 %s1, 4
          %s204 = int_to_ptr.hbm [resolvable:$true] %s203
          %s205 = sshll.u32 [#allocation5], 4
          %s206 = int_to_ptr.vmem [resolvable:$true] %s205
          %211 = dma.hbm_to_vmem [thread:$0]  %s204, 192, %s206, [#allocation6], 64, 64, 4
        $region20: #{tpu_custom_call.1} parent=11 // pred_fallthru
          _
        // Predicated region
        $region21: #{tpu_custom_call.1} parent=11 // pred_check
          %p212 = pneg %p96
        $region22: #{tpu_custom_call.1} parent=11 // pred_check_branch
          %214 = sbr.rel (%p212) target = $region24
        $region23: #{tpu_custom_call.1} parent=11 // pred_region
          _
        $region24: #{tpu_custom_call.1} parent=11 // pred_fallthru
          _
        // Predicated region
        $region25: #{tpu_custom_call.1} parent=11 // pred_check
          %p215 = pneg %p117
        $region26: #{tpu_custom_call.1} parent=11 // pred_check_branch
          %217 = sbr.rel (%p215) target = $region28
        $region27: #{tpu_custom_call.1} parent=11 // pred_region
          %219 = vsyncadd [#allocation6], 0
          %s220 = sshll.u32 %s3, 4
          %s221 = int_to_ptr.hbm [resolvable:$true] %s220
          %s222 = sshll.u32 [#allocation7], 4
          %s223 = int_to_ptr.vmem [resolvable:$true] %s222
          %228 = dma.hbm_to_vmem [thread:$0]  %s221, 1024, %s223, [#allocation6], 64, 64, 4
        $region28: #{tpu_custom_call.1} parent=11 // pred_fallthru
          _
        // Predicated region
        $region29: #{tpu_custom_call.1} parent=11 // pred_check
          %p229 = pneg %p138
        $region30: #{tpu_custom_call.1} parent=11 // pred_check_branch
          %231 = sbr.rel (%p229) target = $region32
        $region31: #{tpu_custom_call.1} parent=11 // pred_region
          _
        $region32: #{tpu_custom_call.1} parent=11 // pred_fallthru
          _
      $region12: #{tpu_custom_call.1} parent=5 // pred_fallthru
        _
      %p232 = scmp.lt.s32.totalorder %s16, 4
      // Predicated region
      $region33: #{tpu_custom_call.1} parent=5 // pred_check
        %p233 = pneg %p232
      $region34: #{tpu_custom_call.1} parent=5 // pred_check_branch
        %235 = sbr.rel (%p233) target = $region36
      $region35: #{tpu_custom_call.1} parent=5 // pred_region
        _
      $region36: #{tpu_custom_call.1} parent=5 // pred_fallthru
        _
      %p236 = scmp.le.s32.totalorder 1, %s16
      %p237 = scmp.lt.s32.totalorder %s16, 5
      %p238 = pnand %p236, %p237
      %p239 = pneg %p238
      // Predicated region
      $region37: #{tpu_custom_call.1} parent=5 // pred_check
        _
      $region38: #{tpu_custom_call.1} parent=5 // pred_check_branch
        %241 = sbr.rel (%p238) target = $region40
      $region39: #{tpu_custom_call.1} parent=5 // pred_region
        %s242 = ssub.s32 %s16, 1
        // Predicated region
        $region41: #{tpu_custom_call.1} parent=39 // pred_check
          %p243 = pneg %p54
        $region42: #{tpu_custom_call.1} parent=39 // pred_check_branch
          %245 = sbr.rel (%p243) target = $region44
        $region43: #{tpu_custom_call.1} parent=39 // pred_region
          %247 = dma.done [#allocation3], 3456
        $region44: #{tpu_custom_call.1} parent=39 // pred_fallthru
          _
        // Predicated region
        $region45: #{tpu_custom_call.1} parent=39 // pred_check
          %p248 = pneg %p75
        $region46: #{tpu_custom_call.1} parent=39 // pred_check_branch
          %250 = sbr.rel (%p248) target = $region48
        $region47: #{tpu_custom_call.1} parent=39 // pred_region
          %252 = dma.done [#allocation6], 192
        $region48: #{tpu_custom_call.1} parent=39 // pred_fallthru
          _
        // Predicated region
        $region49: #{tpu_custom_call.1} parent=39 // pred_check
          %p253 = pneg %p117
        $region50: #{tpu_custom_call.1} parent=39 // pred_check_branch
          %255 = sbr.rel (%p253) target = $region52
        $region51: #{tpu_custom_call.1} parent=39 // pred_region
          %257 = dma.done [#allocation6], 1024
        $region52: #{tpu_custom_call.1} parent=39 // pred_fallthru
          _
        %p258 = pneg %p54
        %p259 = pneg %p51
        %p260 = pneg %p75
        %p261 = pneg %p72
        %p262 = pneg %p96
        %p263 = pneg %p93
        %p264 = pneg %p117
        %p265 = pneg %p114
        %p266 = pneg %p138
        %p267 = pneg %p135
        %p268 = pneg %p166
        %p269 = pneg %p163
        %s270 = sand.u32 %s153, 1
        %s271 = scalar_lea.sflag [#allocation4], %s270
        %s272 = sand.u32 %s153, 1
        %s273 = smul.addr %s272, 128
        %s274 = scalar_lea.vmem [#allocation8], %s273
        %s275 = smul.u32 16, %s26
        %s276 = smul.u32 %s26, 8
        %s277 = smul.u32 %s276, 3
        %s278 = smul.addr %s277, 4
        %s279 = scalar_lea.vmem [#allocation2], %s278
        %v280 = vld [vmem:[%s279] sm:$0xf]
        %v281 = vld [vmem:[%s279 + $0x4] sm:$0xf]
        %v282 = vld [vmem:[%s279 + $0x8] sm:$0xf]
        %v283 = vld [vmem:[%s279 + $0xc] sm:$0xf]
        %v284 = vld [vmem:[%s279 + $0x10] sm:$0xf]
        %v285 = vld [vmem:[%s279 + $0x14] sm:$0xf]
        %v286 = vld [vmem:[%s279 + $0x18] sm:$0xf]
        %v287 = vld [vmem:[%s279 + $0x1c] sm:$0xf]
        %v288 = vld [vmem:[%s279 + $0x20] sm:$0xf]
        %v289 = vld [vmem:[%s279 + $0x24] sm:$0xf]
        %v290 = vld [vmem:[%s279 + $0x28] sm:$0xf]
        %v291 = vld [vmem:[%s279 + $0x2c] sm:$0xf]
        %v292 = vld [vmem:[%s279 + $0x30] sm:$0xf]
        %v293 = vld [vmem:[%s279 + $0x34] sm:$0xf]
        %v294 = vld [vmem:[%s279 + $0x38] sm:$0xf]
        %v295 = vld [vmem:[%s279 + $0x3c] sm:$0xf]
        %v296 = vld [vmem:[%s279 + $0x40] sm:$0xf]
        %v297 = vld [vmem:[%s279 + $0x44] sm:$0xf]
        %v298 = vld [vmem:[%s279 + $0x48] sm:$0xf]
        %v299 = vld [vmem:[%s279 + $0x4c] sm:$0xf]
        %v300 = vld [vmem:[%s279 + $0x50] sm:$0xf]
        %v301 = vld [vmem:[%s279 + $0x54] sm:$0xf]
        %v302 = vld [vmem:[%s279 + $0x58] sm:$0xf]
        %v303 = vld [vmem:[%s279 + $0x5c] sm:$0xf]
        %v304 = vld [vmem:[%s279 + $0x60] sm:$0xf]
        %v305 = vld [vmem:[%s279 + $0x64] sm:$0xf]
        %v306 = vld [vmem:[%s279 + $0x68] sm:$0xf]
        %v307 = vld [vmem:[%s279 + $0x6c] sm:$0xf]
        %v308 = vld [vmem:[%s279 + $0x70] sm:$0xf]
        %v309 = vld [vmem:[%s279 + $0x74] sm:$0xf]
        %v310 = vunpack.c.l.bf16 %v280
        %v311 = vunpack.c.l.bf16 %v281
        %v312 = vunpack.c.l.bf16 %v282
        %v313 = vunpack.c.l.bf16 %v283
        %v314 = vunpack.c.l.bf16 %v284
        %v315 = vunpack.c.l.bf16 %v285
        %v316 = vunpack.c.l.bf16 %v286
        %v317 = vunpack.c.l.bf16 %v287
        %v318 = vunpack.c.l.bf16 %v288
        %v319 = vunpack.c.l.bf16 %v289
        %v320 = vunpack.c.l.bf16 %v290
        %v321 = vunpack.c.l.bf16 %v291
        %v322 = vunpack.c.l.bf16 %v292
        %v323 = vunpack.c.l.bf16 %v293
        %v324 = vunpack.c.l.bf16 %v294
        %v325 = vunpack.c.l.bf16 %v295
        %v326 = vunpack.c.l.bf16 %v296
        %v327 = vunpack.c.l.bf16 %v297
        %v328 = vunpack.c.l.bf16 %v298
        %v329 = vunpack.c.l.bf16 %v299
        %v330 = vunpack.c.l.bf16 %v300
        %v331 = vunpack.c.l.bf16 %v301
        %v332 = vunpack.c.l.bf16 %v302
        %v333 = vunpack.c.l.bf16 %v303
        %v334 = vunpack.c.l.bf16 %v304
        %v335 = vunpack.c.l.bf16 %v305
        %v336 = vunpack.c.l.bf16 %v306
        %v337 = vunpack.c.l.bf16 %v307
        %v338 = vunpack.c.l.bf16 %v308
        %v339 = vunpack.c.l.bf16 %v309
        %v340 = vld [vmem:[#allocation5] sm:$0x7]
        %v341 = vld [vmem:[#allocation5 + $0x4] sm:$0x7]
        %v342 = vld [vmem:[#allocation5 + $0x8] sm:$0x7]
        %v343 = vrot.slane %v310, 1
        %v344 = vrot.slane %v313, 1
        %v345 = vrot.slane %v316, 1
        %v346 = vrot.slane %v319, 1
        %v347 = vrot.slane %v322, 1
        %v348 = vrot.slane %v325, 1
        %v349 = vrot.slane %v328, 1
        %v350 = vrot.slane %v331, 1
        %v351 = vrot.slane %v334, 1
        %v352 = vrot.slane %v337, 1
        %v353 = vrot.slane %v311, 1
        %v354 = vrot.slane %v314, 1
        %v355 = vrot.slane %v317, 1
        %v356 = vrot.slane %v320, 1
        %v357 = vrot.slane %v323, 1
        %v358 = vrot.slane %v326, 1
        %v359 = vrot.slane %v329, 1
        %v360 = vrot.slane %v332, 1
        %v361 = vrot.slane %v335, 1
        %v362 = vrot.slane %v338, 1
        %v363 = vrot.slane %v312, 1
        %v364 = vrot.slane %v315, 1
        %v365 = vrot.slane %v318, 1
        %v366 = vrot.slane %v321, 1
        %v367 = vrot.slane %v324, 1
        %v368 = vrot.slane %v327, 1
        %v369 = vrot.slane %v330, 1
        %v370 = vrot.slane %v333, 1
        %v371 = vrot.slane %v336, 1
        %v372 = vrot.slane %v339, 1
        %v373 = vlaneseq
        %v374 = vshrl.u32 %v373, 7
        %vm375 = vcmp.lt.s32.totalorder %v374, 7
        %v376 = vsel %vm375, %v353, %v363
        %v377 = vsel %vm375, %v354, %v364
        %v378 = vsel %vm375, %v355, %v365
        %v379 = vsel %vm375, %v356, %v366
        %v380 = vsel %vm375, %v357, %v367
        %v381 = vsel %vm375, %v358, %v368
        %v382 = vsel %vm375, %v359, %v369
        %v383 = vsel %vm375, %v360, %v370
        %v384 = vsel %vm375, %v361, %v371
        %v385 = vsel %vm375, %v362, %v372
        %v386 = vsel %vm375, %v343, %v353
        %v387 = vsel %vm375, %v344, %v354
        %v388 = vsel %vm375, %v345, %v355
        %v389 = vsel %vm375, %v346, %v356
        %v390 = vsel %vm375, %v347, %v357
        %v391 = vsel %vm375, %v348, %v358
        %v392 = vsel %vm375, %v349, %v359
        %v393 = vsel %vm375, %v350, %v360
        %v394 = vsel %vm375, %v351, %v361
        %v395 = vsel %vm375, %v352, %v362
        %v396 = vrot.slane %v310, 2
        %v397 = vrot.slane %v313, 2
        %v398 = vrot.slane %v316, 2
        %v399 = vrot.slane %v319, 2
        %v400 = vrot.slane %v322, 2
        %v401 = vrot.slane %v325, 2
        %v402 = vrot.slane %v328, 2
        %v403 = vrot.slane %v331, 2
        %v404 = vrot.slane %v334, 2
        %v405 = vrot.slane %v337, 2
        %v406 = vrot.slane %v311, 2
        %v407 = vrot.slane %v314, 2
        %v408 = vrot.slane %v317, 2
        %v409 = vrot.slane %v320, 2
        %v410 = vrot.slane %v323, 2
        %v411 = vrot.slane %v326, 2
        %v412 = vrot.slane %v329, 2
        %v413 = vrot.slane %v332, 2
        %v414 = vrot.slane %v335, 2
        %v415 = vrot.slane %v338, 2
        %v416 = vrot.slane %v312, 2
        %v417 = vrot.slane %v315, 2
        %v418 = vrot.slane %v318, 2
        %v419 = vrot.slane %v321, 2
        %v420 = vrot.slane %v324, 2
        %v421 = vrot.slane %v327, 2
        %v422 = vrot.slane %v330, 2
        %v423 = vrot.slane %v333, 2
        %v424 = vrot.slane %v336, 2
        %v425 = vrot.slane %v339, 2
        %vm426 = vcmp.lt.s32.totalorder %v374, 6
        %v427 = vsel %vm426, %v406, %v416
        %v428 = vsel %vm426, %v407, %v417
        %v429 = vsel %vm426, %v408, %v418
        %v430 = vsel %vm426, %v409, %v419
        %v431 = vsel %vm426, %v410, %v420
        %v432 = vsel %vm426, %v411, %v421
        %v433 = vsel %vm426, %v412, %v422
        %v434 = vsel %vm426, %v413, %v423
        %v435 = vsel %vm426, %v414, %v424
        %v436 = vsel %vm426, %v415, %v425
        %v437 = vsel %vm426, %v396, %v406
        %v438 = vsel %vm426, %v397, %v407
        %v439 = vsel %vm426, %v398, %v408
        %v440 = vsel %vm426, %v399, %v409
        %v441 = vsel %vm426, %v400, %v410
        %v442 = vsel %vm426, %v401, %v411
        %v443 = vsel %vm426, %v402, %v412
        %v444 = vsel %vm426, %v403, %v413
        %v445 = vsel %vm426, %v404, %v414
        %v446 = vsel %vm426, %v405, %v415
        %v447 = vperm.slane %v340, 0
        %v448 = vmul.f32 %v310, %v447
        %v449 = vmul.f32 %v311, %v447
        %v450 = vmul.f32 %v313, %v447
        %v451 = vmul.f32 %v314, %v447
        %v452 = vmul.f32 %v316, %v447
        %v453 = vmul.f32 %v317, %v447
        %v454 = vmul.f32 %v319, %v447
        %v455 = vmul.f32 %v320, %v447
        %v456 = vmul.f32 %v322, %v447
        %v457 = vmul.f32 %v323, %v447
        %v458 = vmul.f32 %v325, %v447
        %v459 = vmul.f32 %v326, %v447
        %v460 = vmul.f32 %v328, %v447
        %v461 = vmul.f32 %v329, %v447
        %v462 = vmul.f32 %v331, %v447
        %v463 = vmul.f32 %v332, %v447
        %v464 = vld [vmem:[%s2] sm:$0x1]
        %v466 = vperm.slane %v464, 0
        %v468 = vadd.f32 %v448, %v466
        %v469 = vadd.f32 %v449, %v466
        %v470 = vadd.f32 %v450, %v466
        %v471 = vadd.f32 %v451, %v466
        %v472 = vadd.f32 %v452, %v466
        %v473 = vadd.f32 %v453, %v466
        %v474 = vadd.f32 %v454, %v466
        %v475 = vadd.f32 %v455, %v466
        %v476 = vadd.f32 %v456, %v466
        %v477 = vadd.f32 %v457, %v466
        %v478 = vadd.f32 %v458, %v466
        %v479 = vadd.f32 %v459, %v466
        %v480 = vadd.f32 %v460, %v466
        %v481 = vadd.f32 %v461, %v466
        %v482 = vadd.f32 %v462, %v466
        %v483 = vadd.f32 %v463, %v466
        %v484 = vperm.slane %v340, 1
        %v485 = vmul.f32 %v386, %v484
        %v486 = vmul.f32 %v376, %v484
        %v487 = vmul.f32 %v387, %v484
        %v488 = vmul.f32 %v377, %v484
        %v489 = vmul.f32 %v388, %v484
        %v490 = vmul.f32 %v378, %v484
        %v491 = vmul.f32 %v389, %v484
        %v492 = vmul.f32 %v379, %v484
        %v493 = vmul.f32 %v390, %v484
        %v494 = vmul.f32 %v380, %v484
        %v495 = vmul.f32 %v391, %v484
        %v496 = vmul.f32 %v381, %v484
        %v497 = vmul.f32 %v392, %v484
        %v498 = vmul.f32 %v382, %v484
        %v499 = vmul.f32 %v393, %v484
        %v500 = vmul.f32 %v383, %v484
        %v501 = vadd.f32 %v468, %v485
        %v502 = vadd.f32 %v469, %v486
        %v503 = vadd.f32 %v470, %v487
        %v504 = vadd.f32 %v471, %v488
        %v505 = vadd.f32 %v472, %v489
        %v506 = vadd.f32 %v473, %v490
        %v507 = vadd.f32 %v474, %v491
        %v508 = vadd.f32 %v475, %v492
        %v509 = vadd.f32 %v476, %v493
        %v510 = vadd.f32 %v477, %v494
        %v511 = vadd.f32 %v478, %v495
        %v512 = vadd.f32 %v479, %v496
        %v513 = vadd.f32 %v480, %v497
        %v514 = vadd.f32 %v481, %v498
        %v515 = vadd.f32 %v482, %v499
        %v516 = vadd.f32 %v483, %v500
        %v517 = vperm.slane %v340, 2
        %v518 = vmul.f32 %v437, %v517
        %v519 = vmul.f32 %v427, %v517
        %v520 = vmul.f32 %v438, %v517
        %v521 = vmul.f32 %v428, %v517
        %v522 = vmul.f32 %v439, %v517
        %v523 = vmul.f32 %v429, %v517
        %v524 = vmul.f32 %v440, %v517
        %v525 = vmul.f32 %v430, %v517
        %v526 = vmul.f32 %v441, %v517
        %v527 = vmul.f32 %v431, %v517
        %v528 = vmul.f32 %v442, %v517
        %v529 = vmul.f32 %v432, %v517
        %v530 = vmul.f32 %v443, %v517
        %v531 = vmul.f32 %v433, %v517
        %v532 = vmul.f32 %v444, %v517
        %v533 = vmul.f32 %v434, %v517
        %v534 = vadd.f32 %v501, %v518
        %v535 = vadd.f32 %v502, %v519
        %v536 = vadd.f32 %v503, %v520
        %v537 = vadd.f32 %v504, %v521
        %v538 = vadd.f32 %v505, %v522
        %v539 = vadd.f32 %v506, %v523
        %v540 = vadd.f32 %v507, %v524
        %v541 = vadd.f32 %v508, %v525
        %v542 = vadd.f32 %v509, %v526
        %v543 = vadd.f32 %v510, %v527
        %v544 = vadd.f32 %v511, %v528
        %v545 = vadd.f32 %v512, %v529
        %v546 = vadd.f32 %v513, %v530
        %v547 = vadd.f32 %v514, %v531
        %v548 = vadd.f32 %v515, %v532
        %v549 = vadd.f32 %v516, %v533
        %v550 = vperm.slane %v341, 0
        %v551 = vmul.f32 %v313, %v550
        %v552 = vmul.f32 %v314, %v550
        %v553 = vmul.f32 %v316, %v550
        %v554 = vmul.f32 %v317, %v550
        %v555 = vmul.f32 %v319, %v550
        %v556 = vmul.f32 %v320, %v550
        %v557 = vmul.f32 %v322, %v550
        %v558 = vmul.f32 %v323, %v550
        %v559 = vmul.f32 %v325, %v550
        %v560 = vmul.f32 %v326, %v550
        %v561 = vmul.f32 %v328, %v550
        %v562 = vmul.f32 %v329, %v550
        %v563 = vmul.f32 %v331, %v550
        %v564 = vmul.f32 %v332, %v550
        %v565 = vmul.f32 %v334, %v550
        %v566 = vmul.f32 %v335, %v550
        %v567 = vadd.f32 %v534, %v551
        %v568 = vadd.f32 %v535, %v552
        %v569 = vadd.f32 %v536, %v553
        %v570 = vadd.f32 %v537, %v554
        %v571 = vadd.f32 %v538, %v555
        %v572 = vadd.f32 %v539, %v556
        %v573 = vadd.f32 %v540, %v557
        %v574 = vadd.f32 %v541, %v558
        %v575 = vadd.f32 %v542, %v559
        %v576 = vadd.f32 %v543, %v560
        %v577 = vadd.f32 %v544, %v561
        %v578 = vadd.f32 %v545, %v562
        %v579 = vadd.f32 %v546, %v563
        %v580 = vadd.f32 %v547, %v564
        %v581 = vadd.f32 %v548, %v565
        %v582 = vadd.f32 %v549, %v566
        %v583 = vperm.slane %v341, 1
        %v584 = vmul.f32 %v387, %v583
        %v585 = vmul.f32 %v377, %v583
        %v586 = vmul.f32 %v388, %v583
        %v587 = vmul.f32 %v378, %v583
        %v588 = vmul.f32 %v389, %v583
        %v589 = vmul.f32 %v379, %v583
        %v590 = vmul.f32 %v390, %v583
        %v591 = vmul.f32 %v380, %v583
        %v592 = vmul.f32 %v391, %v583
        %v593 = vmul.f32 %v381, %v583
        %v594 = vmul.f32 %v392, %v583
        %v595 = vmul.f32 %v382, %v583
        %v596 = vmul.f32 %v393, %v583
        %v597 = vmul.f32 %v383, %v583
        %v598 = vmul.f32 %v394, %v583
        %v599 = vmul.f32 %v384, %v583
        %v600 = vadd.f32 %v567, %v584
        %v601 = vadd.f32 %v568, %v585
        %v602 = vadd.f32 %v569, %v586
        %v603 = vadd.f32 %v570, %v587
        %v604 = vadd.f32 %v571, %v588
        %v605 = vadd.f32 %v572, %v589
        %v606 = vadd.f32 %v573, %v590
        %v607 = vadd.f32 %v574, %v591
        %v608 = vadd.f32 %v575, %v592
        %v609 = vadd.f32 %v576, %v593
        %v610 = vadd.f32 %v577, %v594
        %v611 = vadd.f32 %v578, %v595
        %v612 = vadd.f32 %v579, %v596
        %v613 = vadd.f32 %v580, %v597
        %v614 = vadd.f32 %v581, %v598
        %v615 = vadd.f32 %v582, %v599
        %v616 = vperm.slane %v341, 2
        %v617 = vmul.f32 %v438, %v616
        %v618 = vmul.f32 %v428, %v616
        %v619 = vmul.f32 %v439, %v616
        %v620 = vmul.f32 %v429, %v616
        %v621 = vmul.f32 %v440, %v616
        %v622 = vmul.f32 %v430, %v616
        %v623 = vmul.f32 %v441, %v616
        %v624 = vmul.f32 %v431, %v616
        %v625 = vmul.f32 %v442, %v616
        %v626 = vmul.f32 %v432, %v616
        %v627 = vmul.f32 %v443, %v616
        %v628 = vmul.f32 %v433, %v616
        %v629 = vmul.f32 %v444, %v616
        %v630 = vmul.f32 %v434, %v616
        %v631 = vmul.f32 %v445, %v616
        %v632 = vmul.f32 %v435, %v616
        %v633 = vadd.f32 %v600, %v617
        %v634 = vadd.f32 %v601, %v618
        %v635 = vadd.f32 %v602, %v619
        %v636 = vadd.f32 %v603, %v620
        %v637 = vadd.f32 %v604, %v621
        %v638 = vadd.f32 %v605, %v622
        %v639 = vadd.f32 %v606, %v623
        %v640 = vadd.f32 %v607, %v624
        %v641 = vadd.f32 %v608, %v625
        %v642 = vadd.f32 %v609, %v626
        %v643 = vadd.f32 %v610, %v627
        %v644 = vadd.f32 %v611, %v628
        %v645 = vadd.f32 %v612, %v629
        %v646 = vadd.f32 %v613, %v630
        %v647 = vadd.f32 %v614, %v631
        %v648 = vadd.f32 %v615, %v632
        %v649 = vperm.slane %v342, 0
        %v650 = vmul.f32 %v316, %v649
        %v651 = vmul.f32 %v317, %v649
        %v652 = vmul.f32 %v319, %v649
        %v653 = vmul.f32 %v320, %v649
        %v654 = vmul.f32 %v322, %v649
        %v655 = vmul.f32 %v323, %v649
        %v656 = vmul.f32 %v325, %v649
        %v657 = vmul.f32 %v326, %v649
        %v658 = vmul.f32 %v328, %v649
        %v659 = vmul.f32 %v329, %v649
        %v660 = vmul.f32 %v331, %v649
        %v661 = vmul.f32 %v332, %v649
        %v662 = vmul.f32 %v334, %v649
        %v663 = vmul.f32 %v335, %v649
        %v664 = vmul.f32 %v337, %v649
        %v665 = vmul.f32 %v338, %v649
        %v666 = vadd.f32 %v633, %v650
        %v667 = vadd.f32 %v634, %v651
        %v668 = vadd.f32 %v635, %v652
        %v669 = vadd.f32 %v636, %v653
        %v670 = vadd.f32 %v637, %v654
        %v671 = vadd.f32 %v638, %v655
        %v672 = vadd.f32 %v639, %v656
        %v673 = vadd.f32 %v640, %v657
        %v674 = vadd.f32 %v641, %v658
        %v675 = vadd.f32 %v642, %v659
        %v676 = vadd.f32 %v643, %v660
        %v677 = vadd.f32 %v644, %v661
        %v678 = vadd.f32 %v645, %v662
        %v679 = vadd.f32 %v646, %v663
        %v680 = vadd.f32 %v647, %v664
        %v681 = vadd.f32 %v648, %v665
        %v682 = vperm.slane %v342, 1
        %v683 = vmul.f32 %v388, %v682
        %v684 = vmul.f32 %v378, %v682
        %v685 = vmul.f32 %v389, %v682
        %v686 = vmul.f32 %v379, %v682
        %v687 = vmul.f32 %v390, %v682
        %v688 = vmul.f32 %v380, %v682
        %v689 = vmul.f32 %v391, %v682
        %v690 = vmul.f32 %v381, %v682
        %v691 = vmul.f32 %v392, %v682
        %v692 = vmul.f32 %v382, %v682
        %v693 = vmul.f32 %v393, %v682
        %v694 = vmul.f32 %v383, %v682
        %v695 = vmul.f32 %v394, %v682
        %v696 = vmul.f32 %v384, %v682
        %v697 = vmul.f32 %v395, %v682
        %v698 = vmul.f32 %v385, %v682
        %v699 = vadd.f32 %v666, %v683
        %v700 = vadd.f32 %v667, %v684
        %v701 = vadd.f32 %v668, %v685
        %v702 = vadd.f32 %v669, %v686
        %v703 = vadd.f32 %v670, %v687
        %v704 = vadd.f32 %v671, %v688
        %v705 = vadd.f32 %v672, %v689
        %v706 = vadd.f32 %v673, %v690
        %v707 = vadd.f32 %v674, %v691
        %v708 = vadd.f32 %v675, %v692
        %v709 = vadd.f32 %v676, %v693
        %v710 = vadd.f32 %v677, %v694
        %v711 = vadd.f32 %v678, %v695
        %v712 = vadd.f32 %v679, %v696
        %v713 = vadd.f32 %v680, %v697
        %v714 = vadd.f32 %v681, %v698
        %v715 = vperm.slane %v342, 2
        %v716 = vmul.f32 %v439, %v715
        %v717 = vmul.f32 %v429, %v715
        %v718 = vmul.f32 %v440, %v715
        %v719 = vmul.f32 %v430, %v715
        %v720 = vmul.f32 %v441, %v715
        %v721 = vmul.f32 %v431, %v715
        %v722 = vmul.f32 %v442, %v715
        %v723 = vmul.f32 %v432, %v715
        %v724 = vmul.f32 %v443, %v715
        %v725 = vmul.f32 %v433, %v715
        %v726 = vmul.f32 %v444, %v715
        %v727 = vmul.f32 %v434, %v715
        %v728 = vmul.f32 %v445, %v715
        %v729 = vmul.f32 %v435, %v715
        %v730 = vmul.f32 %v446, %v715
        %v731 = vmul.f32 %v436, %v715
        %v732 = vadd.f32 %v699, %v716
        %v733 = vadd.f32 %v700, %v717
        %v734 = vadd.f32 %v701, %v718
        %v735 = vadd.f32 %v702, %v719
        %v736 = vadd.f32 %v703, %v720
        %v737 = vadd.f32 %v704, %v721
        %v738 = vadd.f32 %v705, %v722
        %v739 = vadd.f32 %v706, %v723
        %v740 = vadd.f32 %v707, %v724
        %v741 = vadd.f32 %v708, %v725
        %v742 = vadd.f32 %v709, %v726
        %v743 = vadd.f32 %v710, %v727
        %v744 = vadd.f32 %v711, %v728
        %v745 = vadd.f32 %v712, %v729
        %v746 = vadd.f32 %v713, %v730
        %v747 = vadd.f32 %v714, %v731
        %v748 = vmax.f32 %v732, 0.0
        %v749 = vmax.f32 %v733, 0.0
        %v750 = vmax.f32 %v734, 0.0
        %v751 = vmax.f32 %v735, 0.0
        %v752 = vmax.f32 %v736, 0.0
        %v753 = vmax.f32 %v737, 0.0
        %v754 = vmax.f32 %v738, 0.0
        %v755 = vmax.f32 %v739, 0.0
        %v756 = vmax.f32 %v740, 0.0
        %v757 = vmax.f32 %v741, 0.0
        %v758 = vmax.f32 %v742, 0.0
        %v759 = vmax.f32 %v743, 0.0
        %v760 = vmax.f32 %v744, 0.0
        %v761 = vmax.f32 %v745, 0.0
        %v762 = vmax.f32 %v746, 0.0
        %v763 = vmax.f32 %v747, 0.0
        %v764 = vmin.f32 %v748, 6.0
        %v765 = vmin.f32 %v749, 6.0
        %v766 = vmin.f32 %v750, 6.0
        %v767 = vmin.f32 %v751, 6.0
        %v768 = vmin.f32 %v752, 6.0
        %v769 = vmin.f32 %v753, 6.0
        %v770 = vmin.f32 %v754, 6.0
        %v771 = vmin.f32 %v755, 6.0
        %v772 = vmin.f32 %v756, 6.0
        %v773 = vmin.f32 %v757, 6.0
        %v774 = vmin.f32 %v758, 6.0
        %v775 = vmin.f32 %v759, 6.0
        %v776 = vmin.f32 %v760, 6.0
        %v777 = vmin.f32 %v761, 6.0
        %v778 = vmin.f32 %v762, 6.0
        %v779 = vmin.f32 %v763, 6.0
        %v780 = vpack.c.bf16 %v765, %v764
        %v781 = vpack.c.bf16 %v767, %v766
        %v782 = vpack.c.bf16 %v769, %v768
        %v783 = vpack.c.bf16 %v771, %v770
        %v784 = vpack.c.bf16 %v773, %v772
        %v785 = vpack.c.bf16 %v775, %v774
        %v786 = vpack.c.bf16 %v777, %v776
        %v787 = vpack.c.bf16 %v779, %v778
        %v788 = vld [vmem:[#allocation7] sm:$0xf]
        %v789 = vld [vmem:[#allocation7 + $0x4] sm:$0xf]
        %v790 = vld [vmem:[#allocation7 + $0x8] sm:$0xf]
        %v791 = vld [vmem:[#allocation7 + $0xc] sm:$0xf]
        %v792 = vld [vmem:[#allocation7 + $0x10] sm:$0xf]
        %v793 = vld [vmem:[#allocation7 + $0x14] sm:$0xf]
        %v794 = vld [vmem:[#allocation7 + $0x18] sm:$0xf]
        %v795 = vld [vmem:[#allocation7 + $0x1c] sm:$0xf]
        %v796 = vld [vmem:[#allocation7 + $0x20] sm:$0xf]
        %v797 = vld [vmem:[#allocation7 + $0x24] sm:$0xf]
        %v798 = vld [vmem:[#allocation7 + $0x28] sm:$0xf]
        %v799 = vld [vmem:[#allocation7 + $0x2c] sm:$0xf]
        %v800 = vld [vmem:[#allocation7 + $0x30] sm:$0xf]
        %v801 = vld [vmem:[#allocation7 + $0x34] sm:$0xf]
        %v802 = vld [vmem:[#allocation7 + $0x38] sm:$0xf]
        %v803 = vld [vmem:[#allocation7 + $0x3c] sm:$0xf]
        %v804 = vld [vmem:[%s4] sm:$0x1]
        %v806 = vperm.slane %v804, 0
        %v824 = vunpack.c.l.b16 %v788
        %v825 = vunpack.c.l.b16 %v789
        %v826 = vunpack.c.l.b16 %v790
        %v827 = vunpack.c.l.b16 %v791
        %v828 = vunpack.c.l.b16 %v792
        %v829 = vunpack.c.l.b16 %v793
        %v830 = vunpack.c.l.b16 %v794
        %v831 = vunpack.c.l.b16 %v795
        %v832 = vunpack.c.l.b16 %v796
        %v833 = vunpack.c.l.b16 %v797
        %v834 = vunpack.c.l.b16 %v798
        %v835 = vunpack.c.l.b16 %v799
        %v836 = vunpack.c.l.b16 %v800
        %v837 = vunpack.c.l.b16 %v801
        %v838 = vunpack.c.l.b16 %v802
        %v839 = vunpack.c.l.b16 %v803
        %v840 = vpack.c.b16 %v825, %v824
        %v841 = vpack.c.b16 %v827, %v826
        %v842 = vpack.c.b16 %v829, %v828
        %v843 = vpack.c.b16 %v831, %v830
        %v844 = vpack.c.b16 %v833, %v832
        %v845 = vpack.c.b16 %v835, %v834
        %v846 = vpack.c.b16 %v837, %v836
        %v847 = vpack.c.b16 %v839, %v838
        %856 = vmatpush.bf16.msra.mxu0 %v847
        %857 = vmatpush.bf16.msra.mxu0 %v846
        %858 = vmatpush.bf16.msra.mxu0 %v845
        %859 = vmatpush.bf16.msra.mxu0 %v844
        %860 = vmatpush.bf16.msra.mxu0 %v843
        %861 = vmatpush.bf16.msra.mxu0 %v842
        %862 = vmatpush.bf16.msra.mxu0 %v841
        %863 = vmatpush.bf16.msra.mxu0 %v840
        %864 = vmatmul.bf16.gmra.mxu0 %v780
        %v865 = vpop.f32.mrf.mxu0
        %v866 = vadd.f32 %v806, %v865
        %v867 = vpop.f32.mrf.mxu0
        %v868 = vadd.f32 %v806, %v867
        %869 = vmatmul.bf16.gmra.mxu0 %v781
        %v870 = vpop.f32.mrf.mxu0
        %v871 = vadd.f32 %v806, %v870
        %v872 = vpop.f32.mrf.mxu0
        %v873 = vadd.f32 %v806, %v872
        %874 = vmatmul.bf16.gmra.mxu0 %v782
        %v875 = vpop.f32.mrf.mxu0
        %v876 = vadd.f32 %v806, %v875
        %v877 = vpop.f32.mrf.mxu0
        %v878 = vadd.f32 %v806, %v877
        %879 = vmatmul.bf16.gmra.mxu0 %v783
        %v880 = vpop.f32.mrf.mxu0
        %v881 = vadd.f32 %v806, %v880
        %v882 = vpop.f32.mrf.mxu0
        %v883 = vadd.f32 %v806, %v882
        %884 = vmatmul.bf16.gmra.mxu0 %v784
        %v885 = vpop.f32.mrf.mxu0
        %v886 = vadd.f32 %v806, %v885
        %v887 = vpop.f32.mrf.mxu0
        %v888 = vadd.f32 %v806, %v887
        %889 = vmatmul.bf16.gmra.mxu0 %v785
        %v890 = vpop.f32.mrf.mxu0
        %v891 = vadd.f32 %v806, %v890
        %v892 = vpop.f32.mrf.mxu0
        %v893 = vadd.f32 %v806, %v892
        %894 = vmatmul.bf16.gmra.mxu0 %v786
        %v895 = vpop.f32.mrf.mxu0
        %v896 = vadd.f32 %v806, %v895
        %v897 = vpop.f32.mrf.mxu0
        %v898 = vadd.f32 %v806, %v897
        %899 = vmatmul.bf16.gmra.mxu0 %v787
        %v900 = vpop.f32.mrf.mxu0
        %v901 = vadd.f32 %v806, %v900
        %v902 = vpop.f32.mrf.mxu0
        %v903 = vadd.f32 %v806, %v902
        %904 = vdwg.mxu0
        %905 = vst [vmem:[%s274] sm:$0xff] %v866
        %906 = vst [vmem:[%s274 + $0x8] sm:$0xff] %v868
        %907 = vst [vmem:[%s274 + $0x10] sm:$0xff] %v871
        %908 = vst [vmem:[%s274 + $0x18] sm:$0xff] %v873
        %909 = vst [vmem:[%s274 + $0x20] sm:$0xff] %v876
        %910 = vst [vmem:[%s274 + $0x28] sm:$0xff] %v878
        %911 = vst [vmem:[%s274 + $0x30] sm:$0xff] %v881
        %912 = vst [vmem:[%s274 + $0x38] sm:$0xff] %v883
        %913 = vst [vmem:[%s274 + $0x40] sm:$0xff] %v886
        %914 = vst [vmem:[%s274 + $0x48] sm:$0xff] %v888
        %915 = vst [vmem:[%s274 + $0x50] sm:$0xff] %v891
        %916 = vst [vmem:[%s274 + $0x58] sm:$0xff] %v893
        %917 = vst [vmem:[%s274 + $0x60] sm:$0xff] %v896
        %918 = vst [vmem:[%s274 + $0x68] sm:$0xff] %v898
        %919 = vst [vmem:[%s274 + $0x70] sm:$0xff] %v901
        %920 = vst [vmem:[%s274 + $0x78] sm:$0xff] %v903
        %s921 = sand.u32 %s153, 1
        %s922 = scalar_lea.sflag [#allocation4], %s921
        %s923 = sand.u32 %s153, 1
        %s924 = smul.addr %s923, 128
        %s925 = scalar_lea.vmem [#allocation8], %s924
        // Predicated region
        $region53: #{tpu_custom_call.1} parent=39 // pred_check
          %p926 = pneg %p163
        $region54: #{tpu_custom_call.1} parent=39 // pred_check_branch
          %928 = sbr.rel (%p926) target = $region56
        $region55: #{tpu_custom_call.1} parent=39 // pred_region
          %s929 = smul.u32 16, %s26
          %931 = vsyncadd %s922, 0
          %s932 = smul.addr %s25, 32
          %s933 = sadd.s32 %s929, %s932
          %s934 = smul.addr %s933, 8
          %s935 = scalar_lea.hbm %s5, %s934
          %s936 = sshll.u32 %s925, 4
          %s937 = int_to_ptr.vmem [resolvable:$true] %s936
          %s938 = sshll.u32 %s935, 4
          %s939 = int_to_ptr.hbm [resolvable:$true] %s938
          %944 = dma.vmem_to_hbm [thread:$0]  %s937, 2048, %s939, %s922, 128, 128, 8
        $region56: #{tpu_custom_call.1} parent=39 // pred_fallthru
          _
      $region40: #{tpu_custom_call.1} parent=5 // pred_fallthru
        _
      %p945 = scmp.le.s32.totalorder 2, %s16
      // Predicated region
      $region57: #{tpu_custom_call.1} parent=5 // pred_check
        %p946 = pneg %p945
      $region58: #{tpu_custom_call.1} parent=5 // pred_check_branch
        %948 = sbr.rel (%p946) target = $region60
      $region59: #{tpu_custom_call.1} parent=5 // pred_region
        %s949 = ssub.s32 %s16, 2
        // Predicated region
        $region61: #{tpu_custom_call.1} parent=59 // pred_check
          %p950 = pneg %p169
        $region62: #{tpu_custom_call.1} parent=59 // pred_check_branch
          %952 = sbr.rel (%p950) target = $region64
        $region63: #{tpu_custom_call.1} parent=59 // pred_region
          %s953 = sand.u32 %s154, 1
          %s954 = scalar_lea.sflag [#allocation4], %s953
          %s955 = sand.u32 %s154, 1
          %s956 = smul.addr %s955, 128
          %s957 = scalar_lea.vmem [#allocation8], %s956
          %959 = dma.done %s954, 2048
        $region64: #{tpu_custom_call.1} parent=59 // pred_fallthru
          _
      $region60: #{tpu_custom_call.1} parent=5 // pred_fallthru
        _
    $region6: #{tpu_custom_call.1} parent=1 // loop_footer
      %s20 = sadd.s32 1, %s16
    $region7: #{tpu_custom_call.1} parent=1 // loop_footer_branch
      %15 = sbr.rel target = $region3
    $region8: #{tpu_custom_call.1} parent=1 // loop_exit
      _
    %960 = vsyncpa [#allocation3], 1
    %s961 = scalar_lea.sflag [#allocation3], 1
    %962 = vsyncpa %s961, 1
    %963 = vsyncpa [#allocation6], 1
    %964 = vsyncpa [#allocation4], 1
    %s965 = scalar_lea.sflag [#allocation4], 1
    %966 = vsyncpa %s965, 1

// kernel: tpu_custom_call.1
$region0: #{tpu_custom_call.1}
  #allocation0 [shape = 'u32[]', space=smem, size = 0x4, offset = 0x4, fixed_abs, tag = 'smem constant byte address 0x4 - core index']
  #allocation1 [shape = 'u32[72,128]{1,0:T(1,128)}', space=vmem, size = 0x9000, scoped, tag = 'internal scratch']
  %s0 = inlined_call_operand.hbm [shape: bf16[2,18,24,128], index: 0, kind: input, shape index: {}]
  %s1 = inlined_call_operand.hbm [shape: f32[3,3,128], index: 1, kind: input, shape index: {}]
  %s2 = inlined_call_operand.vmem [shape: f32[1,128], index: 2, kind: input, shape index: {}]
  %s3 = inlined_call_operand.hbm [shape: bf16[128,128], index: 3, kind: input, shape index: {}]
  %s4 = inlined_call_operand.vmem [shape: f32[1,128], index: 4, kind: input, shape index: {}]
  %s5 = inlined_call_operand.hbm [shape: f32[2,256,128], index: 5, kind: output, shape index: {}]
  %s6 = sld [smem:[#allocation0]]
  $region65: #{tpu_custom_call.1} parent=0
    _
  %s8 = ssub.s32 1, %s6
  %s9 = scalar_select 0, %s8, %s6
  $region1: #{tpu_custom_call.1} parent=0
    #allocation2 [shape = 'u8[221184]{0}', space=vmem, size = 0x36000, scoped, tag = 'input window, operand 0']
    #allocation3 [shape = 's32[2]{0}', space=sflag, size = 0x8, scoped, tag = 'scoped memory for tpu_custom_call.1']
    #allocation4 [shape = 's32[2]{0}', space=sflag, size = 0x8, scoped, tag = 'scoped memory for tpu_custom_call.1']
    #allocation5 [shape = 'u8[6144]{0}', space=vmem, size = 0x1800, scoped, tag = 'input window, operand 1, single buffered']
    #allocation6 [shape = 's32[1]{0}', space=sflag, size = 0x4, scoped, tag = 'scoped memory for tpu_custom_call.1']
    #allocation7 [shape = 'u8[32768]{0}', space=vmem, size = 0x8000, scoped, tag = 'input window, operand 3, single buffered']
    #allocation8 [shape = 'u8[131072]{0}', space=vmem, size = 0x20000, scoped, tag = 'output window, operand 0']
    %10 = vsyncpa [#allocation3], 0
    %s11 = scalar_lea.sflag [#allocation3], 1
    %12 = vsyncpa %s11, 0
    %13 = vsyncpa [#allocation6], 0
    %14 = vsyncpa [#allocation4], 0
    %s15 = scalar_lea.sflag [#allocation4], 1
    %16 = vsyncpa %s15, 0
    loop: start=0, step=1, limit=6
    $region2: #{tpu_custom_call.1} parent=1 // loop_pre_header
      _
    $region3: #{tpu_custom_call.1} parent=1 // loop_header
      %s18 = sphi 0, %s22
      %p19 = scmp.ge.s32.totalorder %s18, 6
      %s25 = sphi 0, %s37
      %s26 = sphi 0, %s33
      %s27 = sphi 0, %s25
      %s28 = sphi 0, %s26
      %s29 = sphi 0, %s27
      %s30 = sphi 0, %s28
      %s40 = sphi 0, %s42
      %s43 = sphi 0, %s40
      %s44 = sphi 0, %s43
      %s60 = sphi 0, %s44
      %s64 = sphi 0, %s64
      %s66 = sphi 0, %s64
      %s67 = sphi 0, %s66
      %s81 = sphi 0, %s67
      %s85 = sphi 0, %s85
      %s87 = sphi 0, %s85
      %s88 = sphi 0, %s87
      %s102 = sphi 0, %s88
      %s106 = sphi 0, %s106
      %s108 = sphi 0, %s106
      %s109 = sphi 0, %s108
      %s123 = sphi 0, %s109
      %s127 = sphi 0, %s127
      %s129 = sphi 0, %s127
      %s130 = sphi 0, %s129
      %s144 = sphi 0, %s130
      %s152 = sphi 0, %s154
      %s155 = sphi 0, %s152
      %s156 = sphi 0, %s155
      %s172 = sphi 0, %s156
    $region4: #{tpu_custom_call.1} parent=1 // loop_header_branch
      %21 = sbr.rel (%p19) target = $region8
    $region5: #{tpu_custom_call.1} parent=1 // loop_body
      %s23 = ssub.s32 %s18, 1
      %s24 = ssub.s32 %s18, 2
      %s31 = sadd.s32 1, %s26
      %p32 = scmp.ge.s32.totalorder %s31, 2
      %s33 = scalar_select %p32, 0, %s31
      %s34 = sadd.s32 1, %s25
      %s35 = scalar_select %p32, %s34, %s25
      %p36 = scmp.ge.s32.totalorder %s35, 2
      %s37 = scalar_select %p36, 0, %s35
      %s38 = ssub.s32 %s25, %s37
      %p39 = scmp.eq.s32.totalorder %s38, 0
      %s41 = sadd.s32 %s40, 1
      %s42 = scalar_select %p39, %s40, %s41
      %p45 = pneg %p39
      %p46 = scmp.eq.s32.totalorder %s18, 3
      %p47 = por %p45, %p46
      %p48 = scmp.ne.s32.totalorder %s40, %s43
      %p49 = scmp.eq.s32.totalorder %s18, 0
      %p50 = por %p48, %p49
      %p51 = scmp.ne.s32.totalorder %s40, %s43
      %p52 = scmp.eq.s32.totalorder %s23, 3
      %p53 = por %p51, %p52
      %p54 = scmp.ne.s32.totalorder %s43, %s44
      %p55 = scmp.eq.s32.totalorder %s23, 0
      %p56 = por %p54, %p55
      %p57 = scmp.ne.s32.totalorder %s43, %s44
      %p58 = scmp.eq.s32.totalorder %s24, 3
      %p59 = por %p57, %p58
      %p61 = scmp.ne.s32.totalorder %s44, %s60
      %p62 = scmp.eq.s32.totalorder %s24, 0
      %p63 = por %p61, %p62
      %s65 = sadd.s32 %s64, 1
      %p68 = scmp.eq.s32.totalorder %s18, 3
      %p69 = scmp.ne.s32.totalorder %s64, %s66
      %p70 = scmp.eq.s32.totalorder %s18, 0
      %p71 = por %p69, %p70
      %p72 = scmp.ne.s32.totalorder %s64, %s66
      %p73 = scmp.eq.s32.totalorder %s23, 3
      %p74 = por %p72, %p73
      %p75 = scmp.ne.s32.totalorder %s66, %s67
      %p76 = scmp.eq.s32.totalorder %s23, 0
      %p77 = por %p75, %p76
      %p78 = scmp.ne.s32.totalorder %s66, %s67
      %p79 = scmp.eq.s32.totalorder %s24, 3
      %p80 = por %p78, %p79
      %p82 = scmp.ne.s32.totalorder %s67, %s81
      %p83 = scmp.eq.s32.totalorder %s24, 0
      %p84 = por %p82, %p83
      %s86 = sadd.s32 %s85, 1
      %p89 = scmp.eq.s32.totalorder %s18, 3
      %p90 = scmp.ne.s32.totalorder %s85, %s87
      %p91 = scmp.eq.s32.totalorder %s18, 0
      %p92 = por %p90, %p91
      %p93 = scmp.ne.s32.totalorder %s85, %s87
      %p94 = scmp.eq.s32.totalorder %s23, 3
      %p95 = por %p93, %p94
      %p96 = scmp.ne.s32.totalorder %s87, %s88
      %p97 = scmp.eq.s32.totalorder %s23, 0
      %p98 = por %p96, %p97
      %p99 = scmp.ne.s32.totalorder %s87, %s88
      %p100 = scmp.eq.s32.totalorder %s24, 3
      %p101 = por %p99, %p100
      %p103 = scmp.ne.s32.totalorder %s88, %s102
      %p104 = scmp.eq.s32.totalorder %s24, 0
      %p105 = por %p103, %p104
      %s107 = sadd.s32 %s106, 1
      %p110 = scmp.eq.s32.totalorder %s18, 3
      %p111 = scmp.ne.s32.totalorder %s106, %s108
      %p112 = scmp.eq.s32.totalorder %s18, 0
      %p113 = por %p111, %p112
      %p114 = scmp.ne.s32.totalorder %s106, %s108
      %p115 = scmp.eq.s32.totalorder %s23, 3
      %p116 = por %p114, %p115
      %p117 = scmp.ne.s32.totalorder %s108, %s109
      %p118 = scmp.eq.s32.totalorder %s23, 0
      %p119 = por %p117, %p118
      %p120 = scmp.ne.s32.totalorder %s108, %s109
      %p121 = scmp.eq.s32.totalorder %s24, 3
      %p122 = por %p120, %p121
      %p124 = scmp.ne.s32.totalorder %s109, %s123
      %p125 = scmp.eq.s32.totalorder %s24, 0
      %p126 = por %p124, %p125
      %s128 = sadd.s32 %s127, 1
      %p131 = scmp.eq.s32.totalorder %s18, 3
      %p132 = scmp.ne.s32.totalorder %s127, %s129
      %p133 = scmp.eq.s32.totalorder %s18, 0
      %p134 = por %p132, %p133
      %p135 = scmp.ne.s32.totalorder %s127, %s129
      %p136 = scmp.eq.s32.totalorder %s23, 3
      %p137 = por %p135, %p136
      %p138 = scmp.ne.s32.totalorder %s129, %s130
      %p139 = scmp.eq.s32.totalorder %s23, 0
      %p140 = por %p138, %p139
      %p141 = scmp.ne.s32.totalorder %s129, %s130
      %p142 = scmp.eq.s32.totalorder %s24, 3
      %p143 = por %p141, %p142
      %p145 = scmp.ne.s32.totalorder %s130, %s144
      %p146 = scmp.eq.s32.totalorder %s24, 0
      %p147 = por %p145, %p146
      %s148 = ssub.s32 %s25, %s37
      %s149 = ssub.s32 %s26, %s33
      %s150 = sor.u32 %s148, %s149
      %p151 = scmp.eq.s32.totalorder %s150, 0
      %s153 = sadd.s32 %s152, 1
      %s154 = scalar_select %p151, %s152, %s153
      %p157 = pneg %p151
      %p158 = scmp.eq.s32.totalorder %s18, 3
      %p159 = por %p157, %p158
      %p160 = scmp.ne.s32.totalorder %s152, %s155
      %p161 = scmp.eq.s32.totalorder %s18, 0
      %p162 = por %p160, %p161
      %p163 = scmp.ne.s32.totalorder %s152, %s155
      %p164 = scmp.eq.s32.totalorder %s23, 3
      %p165 = por %p163, %p164
      %p166 = scmp.ne.s32.totalorder %s155, %s156
      %p167 = scmp.eq.s32.totalorder %s23, 0
      %p168 = por %p166, %p167
      %p169 = scmp.ne.s32.totalorder %s155, %s156
      %p170 = scmp.eq.s32.totalorder %s24, 3
      %p171 = por %p169, %p170
      %p173 = scmp.ne.s32.totalorder %s156, %s172
      %p174 = scmp.eq.s32.totalorder %s24, 0
      %p175 = por %p173, %p174
      %p176 = scmp.le.s32.totalorder 1, %s18
      %p177 = scmp.lt.s32.totalorder %s18, 5
      %p178 = pnand %p176, %p177
      %p179 = pneg %p178
      // Predicated region
      $region9: #{tpu_custom_call.1} parent=5 // pred_check
        _
      $region10: #{tpu_custom_call.1} parent=5 // pred_check_branch
        %181 = sbr.rel (%p178) target = $region12
      $region11: #{tpu_custom_call.1} parent=5 // pred_region
        %s182 = ssub.s32 %s18, 1
        // Predicated region
        $region13: #{tpu_custom_call.1} parent=11 // pred_check
          %p183 = pneg %p77
        $region14: #{tpu_custom_call.1} parent=11 // pred_check_branch
          %185 = sbr.rel (%p183) target = $region16
        $region15: #{tpu_custom_call.1} parent=11 // pred_region
          %187 = vsyncadd [#allocation6], 0
          %s188 = sshll.u32 %s1, 4
          %s189 = int_to_ptr.hbm [resolvable:$true] %s188
          %s190 = sshll.u32 [#allocation5], 4
          %s191 = int_to_ptr.vmem [resolvable:$true] %s190
          %196 = dma.hbm_to_vmem [thread:$0]  %s189, 192, %s191, [#allocation6], 64, 64, 4
        $region16: #{tpu_custom_call.1} parent=11 // pred_fallthru
          _
        // Predicated region
        $region17: #{tpu_custom_call.1} parent=11 // pred_check
          %p197 = pneg %p98
        $region18: #{tpu_custom_call.1} parent=11 // pred_check_branch
          %199 = sbr.rel (%p197) target = $region20
        $region19: #{tpu_custom_call.1} parent=11 // pred_region
          _
        $region20: #{tpu_custom_call.1} parent=11 // pred_fallthru
          _
        // Predicated region
        $region21: #{tpu_custom_call.1} parent=11 // pred_check
          %p200 = pneg %p119
        $region22: #{tpu_custom_call.1} parent=11 // pred_check_branch
          %202 = sbr.rel (%p200) target = $region24
        $region23: #{tpu_custom_call.1} parent=11 // pred_region
          %204 = vsyncadd [#allocation6], 0
          %s205 = sshll.u32 %s3, 4
          %s206 = int_to_ptr.hbm [resolvable:$true] %s205
          %s207 = sshll.u32 [#allocation7], 4
          %s208 = int_to_ptr.vmem [resolvable:$true] %s207
          %213 = dma.hbm_to_vmem [thread:$0]  %s206, 1024, %s208, [#allocation6], 64, 64, 4
        $region24: #{tpu_custom_call.1} parent=11 // pred_fallthru
          _
        // Predicated region
        $region25: #{tpu_custom_call.1} parent=11 // pred_check
          %p214 = pneg %p140
        $region26: #{tpu_custom_call.1} parent=11 // pred_check_branch
          %216 = sbr.rel (%p214) target = $region28
        $region27: #{tpu_custom_call.1} parent=11 // pred_region
          _
        $region28: #{tpu_custom_call.1} parent=11 // pred_fallthru
          _
      $region12: #{tpu_custom_call.1} parent=5 // pred_fallthru
        _
      %p217 = scmp.lt.s32.totalorder %s18, 4
      // Predicated region
      $region29: #{tpu_custom_call.1} parent=5 // pred_check
        %p218 = pneg %p217
      $region30: #{tpu_custom_call.1} parent=5 // pred_check_branch
        %220 = sbr.rel (%p218) target = $region32
      $region31: #{tpu_custom_call.1} parent=5 // pred_region
        // Predicated region
        $region33: #{tpu_custom_call.1} parent=31 // pred_check
          %p221 = pneg %p50
        $region34: #{tpu_custom_call.1} parent=31 // pred_check_branch
          %223 = sbr.rel (%p221) target = $region36
        $region35: #{tpu_custom_call.1} parent=31 // pred_region
          %s224 = sand.u32 %s40, 1
          %s225 = scalar_lea.sflag [#allocation3], %s224
          %s226 = sand.u32 %s40, 1
          %s227 = smul.addr %s226, 216
          %s228 = scalar_lea.vmem [#allocation2], %s227
          %230 = vsyncadd %s225, 0
          %s231 = smul.addr %s25, 54
          %s232 = smul.addr %s231, 4
          %s233 = scalar_lea.hbm %s0, %s232
          %s234 = sshll.u32 %s233, 4
          %s235 = int_to_ptr.hbm [resolvable:$true] %s234
          %s236 = sshll.u32 %s228, 4
          %s237 = int_to_ptr.vmem [resolvable:$true] %s236
          %242 = dma.hbm_to_vmem [thread:$0]  %s235, 3456, %s237, %s225, 64, 64, 4
        $region36: #{tpu_custom_call.1} parent=31 // pred_fallthru
          _
      $region32: #{tpu_custom_call.1} parent=5 // pred_fallthru
        _
      %p243 = scmp.le.s32.totalorder 1, %s18
      %p244 = scmp.lt.s32.totalorder %s18, 5
      %p245 = pnand %p243, %p244
      %p246 = pneg %p245
      // Predicated region
      $region37: #{tpu_custom_call.1} parent=5 // pred_check
        _
      $region38: #{tpu_custom_call.1} parent=5 // pred_check_branch
        %248 = sbr.rel (%p245) target = $region40
      $region39: #{tpu_custom_call.1} parent=5 // pred_region
        %s249 = ssub.s32 %s18, 1
        %s250 = sand.u32 %s43, 1
        %s251 = scalar_lea.sflag [#allocation3], %s250
        %s252 = sand.u32 %s43, 1
        %s253 = smul.addr %s252, 216
        %s254 = scalar_lea.vmem [#allocation2], %s253
        // Predicated region
        $region41: #{tpu_custom_call.1} parent=39 // pred_check
          %p255 = pneg %p56
        $region42: #{tpu_custom_call.1} parent=39 // pred_check_branch
          %257 = sbr.rel (%p255) target = $region44
        $region43: #{tpu_custom_call.1} parent=39 // pred_region
          %259 = dma.done %s251, 3456
        $region44: #{tpu_custom_call.1} parent=39 // pred_fallthru
          _
        // Predicated region
        $region45: #{tpu_custom_call.1} parent=39 // pred_check
          %p260 = pneg %p77
        $region46: #{tpu_custom_call.1} parent=39 // pred_check_branch
          %262 = sbr.rel (%p260) target = $region48
        $region47: #{tpu_custom_call.1} parent=39 // pred_region
          %264 = dma.done [#allocation6], 192
        $region48: #{tpu_custom_call.1} parent=39 // pred_fallthru
          _
        // Predicated region
        $region49: #{tpu_custom_call.1} parent=39 // pred_check
          %p265 = pneg %p119
        $region50: #{tpu_custom_call.1} parent=39 // pred_check_branch
          %267 = sbr.rel (%p265) target = $region52
        $region51: #{tpu_custom_call.1} parent=39 // pred_region
          %269 = dma.done [#allocation6], 1024
        $region52: #{tpu_custom_call.1} parent=39 // pred_fallthru
          _
        %s270 = sand.u32 %s43, 1
        %s271 = scalar_lea.sflag [#allocation3], %s270
        %s272 = sand.u32 %s43, 1
        %s273 = smul.addr %s272, 216
        %s274 = scalar_lea.vmem [#allocation2], %s273
        %p275 = pneg %p56
        %p276 = pneg %p53
        %p277 = pneg %p77
        %p278 = pneg %p74
        %p279 = pneg %p98
        %p280 = pneg %p95
        %p281 = pneg %p119
        %p282 = pneg %p116
        %p283 = pneg %p140
        %p284 = pneg %p137
        %p285 = pneg %p168
        %p286 = pneg %p165
        %s287 = sand.u32 %s155, 1
        %s288 = scalar_lea.sflag [#allocation4], %s287
        %s289 = sand.u32 %s155, 1
        %s290 = smul.addr %s289, 128
        %s291 = scalar_lea.vmem [#allocation8], %s290
        %s292 = smul.u32 16, %s28
        %s293 = smul.u32 %s28, 8
        %s294 = smul.u32 %s293, 3
        %s295 = smul.addr %s294, 4
        %s296 = scalar_lea.vmem %s254, %s295 [#allocation2]
        %v297 = vld [vmem:[%s296] sm:$0xf]
        %v298 = vld [vmem:[%s296 + $0x4] sm:$0xf]
        %v299 = vld [vmem:[%s296 + $0x8] sm:$0xf]
        %v300 = vld [vmem:[%s296 + $0xc] sm:$0xf]
        %v301 = vld [vmem:[%s296 + $0x10] sm:$0xf]
        %v302 = vld [vmem:[%s296 + $0x14] sm:$0xf]
        %v303 = vld [vmem:[%s296 + $0x18] sm:$0xf]
        %v304 = vld [vmem:[%s296 + $0x1c] sm:$0xf]
        %v305 = vld [vmem:[%s296 + $0x20] sm:$0xf]
        %v306 = vld [vmem:[%s296 + $0x24] sm:$0xf]
        %v307 = vld [vmem:[%s296 + $0x28] sm:$0xf]
        %v308 = vld [vmem:[%s296 + $0x2c] sm:$0xf]
        %v309 = vld [vmem:[%s296 + $0x30] sm:$0xf]
        %v310 = vld [vmem:[%s296 + $0x34] sm:$0xf]
        %v311 = vld [vmem:[%s296 + $0x38] sm:$0xf]
        %v312 = vld [vmem:[%s296 + $0x3c] sm:$0xf]
        %v313 = vld [vmem:[%s296 + $0x40] sm:$0xf]
        %v314 = vld [vmem:[%s296 + $0x44] sm:$0xf]
        %v315 = vld [vmem:[%s296 + $0x48] sm:$0xf]
        %v316 = vld [vmem:[%s296 + $0x4c] sm:$0xf]
        %v317 = vld [vmem:[%s296 + $0x50] sm:$0xf]
        %v318 = vld [vmem:[%s296 + $0x54] sm:$0xf]
        %v319 = vld [vmem:[%s296 + $0x58] sm:$0xf]
        %v320 = vld [vmem:[%s296 + $0x5c] sm:$0xf]
        %v321 = vld [vmem:[%s296 + $0x60] sm:$0xf]
        %v322 = vld [vmem:[%s296 + $0x64] sm:$0xf]
        %v323 = vld [vmem:[%s296 + $0x68] sm:$0xf]
        %v324 = vld [vmem:[%s296 + $0x6c] sm:$0xf]
        %v325 = vld [vmem:[%s296 + $0x70] sm:$0xf]
        %v326 = vld [vmem:[%s296 + $0x74] sm:$0xf]
        %v327 = vunpack.c.l.bf16 %v297
        %v328 = vunpack.c.l.bf16 %v298
        %v329 = vunpack.c.l.bf16 %v299
        %v330 = vunpack.c.l.bf16 %v300
        %v331 = vunpack.c.l.bf16 %v301
        %v332 = vunpack.c.l.bf16 %v302
        %v333 = vunpack.c.l.bf16 %v303
        %v334 = vunpack.c.l.bf16 %v304
        %v335 = vunpack.c.l.bf16 %v305
        %v336 = vunpack.c.l.bf16 %v306
        %v337 = vunpack.c.l.bf16 %v307
        %v338 = vunpack.c.l.bf16 %v308
        %v339 = vunpack.c.l.bf16 %v309
        %v340 = vunpack.c.l.bf16 %v310
        %v341 = vunpack.c.l.bf16 %v311
        %v342 = vunpack.c.l.bf16 %v312
        %v343 = vunpack.c.l.bf16 %v313
        %v344 = vunpack.c.l.bf16 %v314
        %v345 = vunpack.c.l.bf16 %v315
        %v346 = vunpack.c.l.bf16 %v316
        %v347 = vunpack.c.l.bf16 %v317
        %v348 = vunpack.c.l.bf16 %v318
        %v349 = vunpack.c.l.bf16 %v319
        %v350 = vunpack.c.l.bf16 %v320
        %v351 = vunpack.c.l.bf16 %v321
        %v352 = vunpack.c.l.bf16 %v322
        %v353 = vunpack.c.l.bf16 %v323
        %v354 = vunpack.c.l.bf16 %v324
        %v355 = vunpack.c.l.bf16 %v325
        %v356 = vunpack.c.l.bf16 %v326
        %v357 = vld [vmem:[#allocation5] sm:$0x7]
        %v358 = vld [vmem:[#allocation5 + $0x4] sm:$0x7]
        %v359 = vld [vmem:[#allocation5 + $0x8] sm:$0x7]
        %v360 = vrot.slane %v327, 1
        %v361 = vrot.slane %v330, 1
        %v362 = vrot.slane %v333, 1
        %v363 = vrot.slane %v336, 1
        %v364 = vrot.slane %v339, 1
        %v365 = vrot.slane %v342, 1
        %v366 = vrot.slane %v345, 1
        %v367 = vrot.slane %v348, 1
        %v368 = vrot.slane %v351, 1
        %v369 = vrot.slane %v354, 1
        %v370 = vrot.slane %v328, 1
        %v371 = vrot.slane %v331, 1
        %v372 = vrot.slane %v334, 1
        %v373 = vrot.slane %v337, 1
        %v374 = vrot.slane %v340, 1
        %v375 = vrot.slane %v343, 1
        %v376 = vrot.slane %v346, 1
        %v377 = vrot.slane %v349, 1
        %v378 = vrot.slane %v352, 1
        %v379 = vrot.slane %v355, 1
        %v380 = vrot.slane %v329, 1
        %v381 = vrot.slane %v332, 1
        %v382 = vrot.slane %v335, 1
        %v383 = vrot.slane %v338, 1
        %v384 = vrot.slane %v341, 1
        %v385 = vrot.slane %v344, 1
        %v386 = vrot.slane %v347, 1
        %v387 = vrot.slane %v350, 1
        %v388 = vrot.slane %v353, 1
        %v389 = vrot.slane %v356, 1
        %v390 = vlaneseq
        %v391 = vshrl.u32 %v390, 7
        %vm392 = vcmp.lt.s32.totalorder %v391, 7
        %v393 = vsel %vm392, %v370, %v380
        %v394 = vsel %vm392, %v371, %v381
        %v395 = vsel %vm392, %v372, %v382
        %v396 = vsel %vm392, %v373, %v383
        %v397 = vsel %vm392, %v374, %v384
        %v398 = vsel %vm392, %v375, %v385
        %v399 = vsel %vm392, %v376, %v386
        %v400 = vsel %vm392, %v377, %v387
        %v401 = vsel %vm392, %v378, %v388
        %v402 = vsel %vm392, %v379, %v389
        %v403 = vsel %vm392, %v360, %v370
        %v404 = vsel %vm392, %v361, %v371
        %v405 = vsel %vm392, %v362, %v372
        %v406 = vsel %vm392, %v363, %v373
        %v407 = vsel %vm392, %v364, %v374
        %v408 = vsel %vm392, %v365, %v375
        %v409 = vsel %vm392, %v366, %v376
        %v410 = vsel %vm392, %v367, %v377
        %v411 = vsel %vm392, %v368, %v378
        %v412 = vsel %vm392, %v369, %v379
        %v413 = vrot.slane %v327, 2
        %v414 = vrot.slane %v330, 2
        %v415 = vrot.slane %v333, 2
        %v416 = vrot.slane %v336, 2
        %v417 = vrot.slane %v339, 2
        %v418 = vrot.slane %v342, 2
        %v419 = vrot.slane %v345, 2
        %v420 = vrot.slane %v348, 2
        %v421 = vrot.slane %v351, 2
        %v422 = vrot.slane %v354, 2
        %v423 = vrot.slane %v328, 2
        %v424 = vrot.slane %v331, 2
        %v425 = vrot.slane %v334, 2
        %v426 = vrot.slane %v337, 2
        %v427 = vrot.slane %v340, 2
        %v428 = vrot.slane %v343, 2
        %v429 = vrot.slane %v346, 2
        %v430 = vrot.slane %v349, 2
        %v431 = vrot.slane %v352, 2
        %v432 = vrot.slane %v355, 2
        %v433 = vrot.slane %v329, 2
        %v434 = vrot.slane %v332, 2
        %v435 = vrot.slane %v335, 2
        %v436 = vrot.slane %v338, 2
        %v437 = vrot.slane %v341, 2
        %v438 = vrot.slane %v344, 2
        %v439 = vrot.slane %v347, 2
        %v440 = vrot.slane %v350, 2
        %v441 = vrot.slane %v353, 2
        %v442 = vrot.slane %v356, 2
        %vm443 = vcmp.lt.s32.totalorder %v391, 6
        %v444 = vsel %vm443, %v423, %v433
        %v445 = vsel %vm443, %v424, %v434
        %v446 = vsel %vm443, %v425, %v435
        %v447 = vsel %vm443, %v426, %v436
        %v448 = vsel %vm443, %v427, %v437
        %v449 = vsel %vm443, %v428, %v438
        %v450 = vsel %vm443, %v429, %v439
        %v451 = vsel %vm443, %v430, %v440
        %v452 = vsel %vm443, %v431, %v441
        %v453 = vsel %vm443, %v432, %v442
        %v454 = vsel %vm443, %v413, %v423
        %v455 = vsel %vm443, %v414, %v424
        %v456 = vsel %vm443, %v415, %v425
        %v457 = vsel %vm443, %v416, %v426
        %v458 = vsel %vm443, %v417, %v427
        %v459 = vsel %vm443, %v418, %v428
        %v460 = vsel %vm443, %v419, %v429
        %v461 = vsel %vm443, %v420, %v430
        %v462 = vsel %vm443, %v421, %v431
        %v463 = vsel %vm443, %v422, %v432
        %v464 = vperm.slane %v357, 0
        %v465 = vmul.f32 %v327, %v464
        %v466 = vmul.f32 %v328, %v464
        %v467 = vmul.f32 %v330, %v464
        %v468 = vmul.f32 %v331, %v464
        %v469 = vmul.f32 %v333, %v464
        %v470 = vmul.f32 %v334, %v464
        %v471 = vmul.f32 %v336, %v464
        %v472 = vmul.f32 %v337, %v464
        %v473 = vmul.f32 %v339, %v464
        %v474 = vmul.f32 %v340, %v464
        %v475 = vmul.f32 %v342, %v464
        %v476 = vmul.f32 %v343, %v464
        %v477 = vmul.f32 %v345, %v464
        %v478 = vmul.f32 %v346, %v464
        %v479 = vmul.f32 %v348, %v464
        %v480 = vmul.f32 %v349, %v464
        %v481 = vld [vmem:[%s2] sm:$0x1]
        %v483 = vperm.slane %v481, 0
        %v485 = vadd.f32 %v465, %v483
        %v486 = vadd.f32 %v466, %v483
        %v487 = vadd.f32 %v467, %v483
        %v488 = vadd.f32 %v468, %v483
        %v489 = vadd.f32 %v469, %v483
        %v490 = vadd.f32 %v470, %v483
        %v491 = vadd.f32 %v471, %v483
        %v492 = vadd.f32 %v472, %v483
        %v493 = vadd.f32 %v473, %v483
        %v494 = vadd.f32 %v474, %v483
        %v495 = vadd.f32 %v475, %v483
        %v496 = vadd.f32 %v476, %v483
        %v497 = vadd.f32 %v477, %v483
        %v498 = vadd.f32 %v478, %v483
        %v499 = vadd.f32 %v479, %v483
        %v500 = vadd.f32 %v480, %v483
        %v501 = vperm.slane %v357, 1
        %v502 = vmul.f32 %v403, %v501
        %v503 = vmul.f32 %v393, %v501
        %v504 = vmul.f32 %v404, %v501
        %v505 = vmul.f32 %v394, %v501
        %v506 = vmul.f32 %v405, %v501
        %v507 = vmul.f32 %v395, %v501
        %v508 = vmul.f32 %v406, %v501
        %v509 = vmul.f32 %v396, %v501
        %v510 = vmul.f32 %v407, %v501
        %v511 = vmul.f32 %v397, %v501
        %v512 = vmul.f32 %v408, %v501
        %v513 = vmul.f32 %v398, %v501
        %v514 = vmul.f32 %v409, %v501
        %v515 = vmul.f32 %v399, %v501
        %v516 = vmul.f32 %v410, %v501
        %v517 = vmul.f32 %v400, %v501
        %v518 = vadd.f32 %v485, %v502
        %v519 = vadd.f32 %v486, %v503
        %v520 = vadd.f32 %v487, %v504
        %v521 = vadd.f32 %v488, %v505
        %v522 = vadd.f32 %v489, %v506
        %v523 = vadd.f32 %v490, %v507
        %v524 = vadd.f32 %v491, %v508
        %v525 = vadd.f32 %v492, %v509
        %v526 = vadd.f32 %v493, %v510
        %v527 = vadd.f32 %v494, %v511
        %v528 = vadd.f32 %v495, %v512
        %v529 = vadd.f32 %v496, %v513
        %v530 = vadd.f32 %v497, %v514
        %v531 = vadd.f32 %v498, %v515
        %v532 = vadd.f32 %v499, %v516
        %v533 = vadd.f32 %v500, %v517
        %v534 = vperm.slane %v357, 2
        %v535 = vmul.f32 %v454, %v534
        %v536 = vmul.f32 %v444, %v534
        %v537 = vmul.f32 %v455, %v534
        %v538 = vmul.f32 %v445, %v534
        %v539 = vmul.f32 %v456, %v534
        %v540 = vmul.f32 %v446, %v534
        %v541 = vmul.f32 %v457, %v534
        %v542 = vmul.f32 %v447, %v534
        %v543 = vmul.f32 %v458, %v534
        %v544 = vmul.f32 %v448, %v534
        %v545 = vmul.f32 %v459, %v534
        %v546 = vmul.f32 %v449, %v534
        %v547 = vmul.f32 %v460, %v534
        %v548 = vmul.f32 %v450, %v534
        %v549 = vmul.f32 %v461, %v534
        %v550 = vmul.f32 %v451, %v534
        %v551 = vadd.f32 %v518, %v535
        %v552 = vadd.f32 %v519, %v536
        %v553 = vadd.f32 %v520, %v537
        %v554 = vadd.f32 %v521, %v538
        %v555 = vadd.f32 %v522, %v539
        %v556 = vadd.f32 %v523, %v540
        %v557 = vadd.f32 %v524, %v541
        %v558 = vadd.f32 %v525, %v542
        %v559 = vadd.f32 %v526, %v543
        %v560 = vadd.f32 %v527, %v544
        %v561 = vadd.f32 %v528, %v545
        %v562 = vadd.f32 %v529, %v546
        %v563 = vadd.f32 %v530, %v547
        %v564 = vadd.f32 %v531, %v548
        %v565 = vadd.f32 %v532, %v549
        %v566 = vadd.f32 %v533, %v550
        %v567 = vperm.slane %v358, 0
        %v568 = vmul.f32 %v330, %v567
        %v569 = vmul.f32 %v331, %v567
        %v570 = vmul.f32 %v333, %v567
        %v571 = vmul.f32 %v334, %v567
        %v572 = vmul.f32 %v336, %v567
        %v573 = vmul.f32 %v337, %v567
        %v574 = vmul.f32 %v339, %v567
        %v575 = vmul.f32 %v340, %v567
        %v576 = vmul.f32 %v342, %v567
        %v577 = vmul.f32 %v343, %v567
        %v578 = vmul.f32 %v345, %v567
        %v579 = vmul.f32 %v346, %v567
        %v580 = vmul.f32 %v348, %v567
        %v581 = vmul.f32 %v349, %v567
        %v582 = vmul.f32 %v351, %v567
        %v583 = vmul.f32 %v352, %v567
        %v584 = vadd.f32 %v551, %v568
        %v585 = vadd.f32 %v552, %v569
        %v586 = vadd.f32 %v553, %v570
        %v587 = vadd.f32 %v554, %v571
        %v588 = vadd.f32 %v555, %v572
        %v589 = vadd.f32 %v556, %v573
        %v590 = vadd.f32 %v557, %v574
        %v591 = vadd.f32 %v558, %v575
        %v592 = vadd.f32 %v559, %v576
        %v593 = vadd.f32 %v560, %v577
        %v594 = vadd.f32 %v561, %v578
        %v595 = vadd.f32 %v562, %v579
        %v596 = vadd.f32 %v563, %v580
        %v597 = vadd.f32 %v564, %v581
        %v598 = vadd.f32 %v565, %v582
        %v599 = vadd.f32 %v566, %v583
        %v600 = vperm.slane %v358, 1
        %v601 = vmul.f32 %v404, %v600
        %v602 = vmul.f32 %v394, %v600
        %v603 = vmul.f32 %v405, %v600
        %v604 = vmul.f32 %v395, %v600
        %v605 = vmul.f32 %v406, %v600
        %v606 = vmul.f32 %v396, %v600
        %v607 = vmul.f32 %v407, %v600
        %v608 = vmul.f32 %v397, %v600
        %v609 = vmul.f32 %v408, %v600
        %v610 = vmul.f32 %v398, %v600
        %v611 = vmul.f32 %v409, %v600
        %v612 = vmul.f32 %v399, %v600
        %v613 = vmul.f32 %v410, %v600
        %v614 = vmul.f32 %v400, %v600
        %v615 = vmul.f32 %v411, %v600
        %v616 = vmul.f32 %v401, %v600
        %v617 = vadd.f32 %v584, %v601
        %v618 = vadd.f32 %v585, %v602
        %v619 = vadd.f32 %v586, %v603
        %v620 = vadd.f32 %v587, %v604
        %v621 = vadd.f32 %v588, %v605
        %v622 = vadd.f32 %v589, %v606
        %v623 = vadd.f32 %v590, %v607
        %v624 = vadd.f32 %v591, %v608
        %v625 = vadd.f32 %v592, %v609
        %v626 = vadd.f32 %v593, %v610
        %v627 = vadd.f32 %v594, %v611
        %v628 = vadd.f32 %v595, %v612
        %v629 = vadd.f32 %v596, %v613
        %v630 = vadd.f32 %v597, %v614
        %v631 = vadd.f32 %v598, %v615
        %v632 = vadd.f32 %v599, %v616
        %v633 = vperm.slane %v358, 2
        %v634 = vmul.f32 %v455, %v633
        %v635 = vmul.f32 %v445, %v633
        %v636 = vmul.f32 %v456, %v633
        %v637 = vmul.f32 %v446, %v633
        %v638 = vmul.f32 %v457, %v633
        %v639 = vmul.f32 %v447, %v633
        %v640 = vmul.f32 %v458, %v633
        %v641 = vmul.f32 %v448, %v633
        %v642 = vmul.f32 %v459, %v633
        %v643 = vmul.f32 %v449, %v633
        %v644 = vmul.f32 %v460, %v633
        %v645 = vmul.f32 %v450, %v633
        %v646 = vmul.f32 %v461, %v633
        %v647 = vmul.f32 %v451, %v633
        %v648 = vmul.f32 %v462, %v633
        %v649 = vmul.f32 %v452, %v633
        %v650 = vadd.f32 %v617, %v634
        %v651 = vadd.f32 %v618, %v635
        %v652 = vadd.f32 %v619, %v636
        %v653 = vadd.f32 %v620, %v637
        %v654 = vadd.f32 %v621, %v638
        %v655 = vadd.f32 %v622, %v639
        %v656 = vadd.f32 %v623, %v640
        %v657 = vadd.f32 %v624, %v641
        %v658 = vadd.f32 %v625, %v642
        %v659 = vadd.f32 %v626, %v643
        %v660 = vadd.f32 %v627, %v644
        %v661 = vadd.f32 %v628, %v645
        %v662 = vadd.f32 %v629, %v646
        %v663 = vadd.f32 %v630, %v647
        %v664 = vadd.f32 %v631, %v648
        %v665 = vadd.f32 %v632, %v649
        %v666 = vperm.slane %v359, 0
        %v667 = vmul.f32 %v333, %v666
        %v668 = vmul.f32 %v334, %v666
        %v669 = vmul.f32 %v336, %v666
        %v670 = vmul.f32 %v337, %v666
        %v671 = vmul.f32 %v339, %v666
        %v672 = vmul.f32 %v340, %v666
        %v673 = vmul.f32 %v342, %v666
        %v674 = vmul.f32 %v343, %v666
        %v675 = vmul.f32 %v345, %v666
        %v676 = vmul.f32 %v346, %v666
        %v677 = vmul.f32 %v348, %v666
        %v678 = vmul.f32 %v349, %v666
        %v679 = vmul.f32 %v351, %v666
        %v680 = vmul.f32 %v352, %v666
        %v681 = vmul.f32 %v354, %v666
        %v682 = vmul.f32 %v355, %v666
        %v683 = vadd.f32 %v650, %v667
        %v684 = vadd.f32 %v651, %v668
        %v685 = vadd.f32 %v652, %v669
        %v686 = vadd.f32 %v653, %v670
        %v687 = vadd.f32 %v654, %v671
        %v688 = vadd.f32 %v655, %v672
        %v689 = vadd.f32 %v656, %v673
        %v690 = vadd.f32 %v657, %v674
        %v691 = vadd.f32 %v658, %v675
        %v692 = vadd.f32 %v659, %v676
        %v693 = vadd.f32 %v660, %v677
        %v694 = vadd.f32 %v661, %v678
        %v695 = vadd.f32 %v662, %v679
        %v696 = vadd.f32 %v663, %v680
        %v697 = vadd.f32 %v664, %v681
        %v698 = vadd.f32 %v665, %v682
        %v699 = vperm.slane %v359, 1
        %v700 = vmul.f32 %v405, %v699
        %v701 = vmul.f32 %v395, %v699
        %v702 = vmul.f32 %v406, %v699
        %v703 = vmul.f32 %v396, %v699
        %v704 = vmul.f32 %v407, %v699
        %v705 = vmul.f32 %v397, %v699
        %v706 = vmul.f32 %v408, %v699
        %v707 = vmul.f32 %v398, %v699
        %v708 = vmul.f32 %v409, %v699
        %v709 = vmul.f32 %v399, %v699
        %v710 = vmul.f32 %v410, %v699
        %v711 = vmul.f32 %v400, %v699
        %v712 = vmul.f32 %v411, %v699
        %v713 = vmul.f32 %v401, %v699
        %v714 = vmul.f32 %v412, %v699
        %v715 = vmul.f32 %v402, %v699
        %v716 = vadd.f32 %v683, %v700
        %v717 = vadd.f32 %v684, %v701
        %v718 = vadd.f32 %v685, %v702
        %v719 = vadd.f32 %v686, %v703
        %v720 = vadd.f32 %v687, %v704
        %v721 = vadd.f32 %v688, %v705
        %v722 = vadd.f32 %v689, %v706
        %v723 = vadd.f32 %v690, %v707
        %v724 = vadd.f32 %v691, %v708
        %v725 = vadd.f32 %v692, %v709
        %v726 = vadd.f32 %v693, %v710
        %v727 = vadd.f32 %v694, %v711
        %v728 = vadd.f32 %v695, %v712
        %v729 = vadd.f32 %v696, %v713
        %v730 = vadd.f32 %v697, %v714
        %v731 = vadd.f32 %v698, %v715
        %v732 = vperm.slane %v359, 2
        %v733 = vmul.f32 %v456, %v732
        %v734 = vmul.f32 %v446, %v732
        %v735 = vmul.f32 %v457, %v732
        %v736 = vmul.f32 %v447, %v732
        %v737 = vmul.f32 %v458, %v732
        %v738 = vmul.f32 %v448, %v732
        %v739 = vmul.f32 %v459, %v732
        %v740 = vmul.f32 %v449, %v732
        %v741 = vmul.f32 %v460, %v732
        %v742 = vmul.f32 %v450, %v732
        %v743 = vmul.f32 %v461, %v732
        %v744 = vmul.f32 %v451, %v732
        %v745 = vmul.f32 %v462, %v732
        %v746 = vmul.f32 %v452, %v732
        %v747 = vmul.f32 %v463, %v732
        %v748 = vmul.f32 %v453, %v732
        %v749 = vadd.f32 %v716, %v733
        %v750 = vadd.f32 %v717, %v734
        %v751 = vadd.f32 %v718, %v735
        %v752 = vadd.f32 %v719, %v736
        %v753 = vadd.f32 %v720, %v737
        %v754 = vadd.f32 %v721, %v738
        %v755 = vadd.f32 %v722, %v739
        %v756 = vadd.f32 %v723, %v740
        %v757 = vadd.f32 %v724, %v741
        %v758 = vadd.f32 %v725, %v742
        %v759 = vadd.f32 %v726, %v743
        %v760 = vadd.f32 %v727, %v744
        %v761 = vadd.f32 %v728, %v745
        %v762 = vadd.f32 %v729, %v746
        %v763 = vadd.f32 %v730, %v747
        %v764 = vadd.f32 %v731, %v748
        %v765 = vmax.f32 %v749, 0.0
        %v766 = vmax.f32 %v750, 0.0
        %v767 = vmax.f32 %v751, 0.0
        %v768 = vmax.f32 %v752, 0.0
        %v769 = vmax.f32 %v753, 0.0
        %v770 = vmax.f32 %v754, 0.0
        %v771 = vmax.f32 %v755, 0.0
        %v772 = vmax.f32 %v756, 0.0
        %v773 = vmax.f32 %v757, 0.0
        %v774 = vmax.f32 %v758, 0.0
        %v775 = vmax.f32 %v759, 0.0
        %v776 = vmax.f32 %v760, 0.0
        %v777 = vmax.f32 %v761, 0.0
        %v778 = vmax.f32 %v762, 0.0
        %v779 = vmax.f32 %v763, 0.0
        %v780 = vmax.f32 %v764, 0.0
        %v781 = vmin.f32 %v765, 6.0
        %v782 = vmin.f32 %v766, 6.0
        %v783 = vmin.f32 %v767, 6.0
        %v784 = vmin.f32 %v768, 6.0
        %v785 = vmin.f32 %v769, 6.0
        %v786 = vmin.f32 %v770, 6.0
        %v787 = vmin.f32 %v771, 6.0
        %v788 = vmin.f32 %v772, 6.0
        %v789 = vmin.f32 %v773, 6.0
        %v790 = vmin.f32 %v774, 6.0
        %v791 = vmin.f32 %v775, 6.0
        %v792 = vmin.f32 %v776, 6.0
        %v793 = vmin.f32 %v777, 6.0
        %v794 = vmin.f32 %v778, 6.0
        %v795 = vmin.f32 %v779, 6.0
        %v796 = vmin.f32 %v780, 6.0
        %v797 = vpack.c.bf16 %v782, %v781
        %v798 = vpack.c.bf16 %v784, %v783
        %v799 = vpack.c.bf16 %v786, %v785
        %v800 = vpack.c.bf16 %v788, %v787
        %v801 = vpack.c.bf16 %v790, %v789
        %v802 = vpack.c.bf16 %v792, %v791
        %v803 = vpack.c.bf16 %v794, %v793
        %v804 = vpack.c.bf16 %v796, %v795
        %v805 = vld [vmem:[#allocation7] sm:$0xf]
        %v806 = vld [vmem:[#allocation7 + $0x4] sm:$0xf]
        %v807 = vld [vmem:[#allocation7 + $0x8] sm:$0xf]
        %v808 = vld [vmem:[#allocation7 + $0xc] sm:$0xf]
        %v809 = vld [vmem:[#allocation7 + $0x10] sm:$0xf]
        %v810 = vld [vmem:[#allocation7 + $0x14] sm:$0xf]
        %v811 = vld [vmem:[#allocation7 + $0x18] sm:$0xf]
        %v812 = vld [vmem:[#allocation7 + $0x1c] sm:$0xf]
        %v813 = vld [vmem:[#allocation7 + $0x20] sm:$0xf]
        %v814 = vld [vmem:[#allocation7 + $0x24] sm:$0xf]
        %v815 = vld [vmem:[#allocation7 + $0x28] sm:$0xf]
        %v816 = vld [vmem:[#allocation7 + $0x2c] sm:$0xf]
        %v817 = vld [vmem:[#allocation7 + $0x30] sm:$0xf]
        %v818 = vld [vmem:[#allocation7 + $0x34] sm:$0xf]
        %v819 = vld [vmem:[#allocation7 + $0x38] sm:$0xf]
        %v820 = vld [vmem:[#allocation7 + $0x3c] sm:$0xf]
        %v821 = vld [vmem:[%s4] sm:$0x1]
        %v823 = vperm.slane %v821, 0
        %v841 = vunpack.c.l.b16 %v805
        %v842 = vunpack.c.l.b16 %v806
        %v843 = vunpack.c.l.b16 %v807
        %v844 = vunpack.c.l.b16 %v808
        %v845 = vunpack.c.l.b16 %v809
        %v846 = vunpack.c.l.b16 %v810
        %v847 = vunpack.c.l.b16 %v811
        %v848 = vunpack.c.l.b16 %v812
        %v849 = vunpack.c.l.b16 %v813
        %v850 = vunpack.c.l.b16 %v814
        %v851 = vunpack.c.l.b16 %v815
        %v852 = vunpack.c.l.b16 %v816
        %v853 = vunpack.c.l.b16 %v817
        %v854 = vunpack.c.l.b16 %v818
        %v855 = vunpack.c.l.b16 %v819
        %v856 = vunpack.c.l.b16 %v820
        %v857 = vpack.c.b16 %v842, %v841
        %v858 = vpack.c.b16 %v844, %v843
        %v859 = vpack.c.b16 %v846, %v845
        %v860 = vpack.c.b16 %v848, %v847
        %v861 = vpack.c.b16 %v850, %v849
        %v862 = vpack.c.b16 %v852, %v851
        %v863 = vpack.c.b16 %v854, %v853
        %v864 = vpack.c.b16 %v856, %v855
        %873 = vmatpush.bf16.msra.mxu0 %v864
        %874 = vmatpush.bf16.msra.mxu0 %v863
        %875 = vmatpush.bf16.msra.mxu0 %v862
        %876 = vmatpush.bf16.msra.mxu0 %v861
        %877 = vmatpush.bf16.msra.mxu0 %v860
        %878 = vmatpush.bf16.msra.mxu0 %v859
        %879 = vmatpush.bf16.msra.mxu0 %v858
        %880 = vmatpush.bf16.msra.mxu0 %v857
        %881 = vmatmul.bf16.gmra.mxu0 %v797
        %v882 = vpop.f32.mrf.mxu0
        %v883 = vadd.f32 %v823, %v882
        %v884 = vpop.f32.mrf.mxu0
        %v885 = vadd.f32 %v823, %v884
        %886 = vmatmul.bf16.gmra.mxu0 %v798
        %v887 = vpop.f32.mrf.mxu0
        %v888 = vadd.f32 %v823, %v887
        %v889 = vpop.f32.mrf.mxu0
        %v890 = vadd.f32 %v823, %v889
        %891 = vmatmul.bf16.gmra.mxu0 %v799
        %v892 = vpop.f32.mrf.mxu0
        %v893 = vadd.f32 %v823, %v892
        %v894 = vpop.f32.mrf.mxu0
        %v895 = vadd.f32 %v823, %v894
        %896 = vmatmul.bf16.gmra.mxu0 %v800
        %v897 = vpop.f32.mrf.mxu0
        %v898 = vadd.f32 %v823, %v897
        %v899 = vpop.f32.mrf.mxu0
        %v900 = vadd.f32 %v823, %v899
        %901 = vmatmul.bf16.gmra.mxu0 %v801
        %v902 = vpop.f32.mrf.mxu0
        %v903 = vadd.f32 %v823, %v902
        %v904 = vpop.f32.mrf.mxu0
        %v905 = vadd.f32 %v823, %v904
        %906 = vmatmul.bf16.gmra.mxu0 %v802
        %v907 = vpop.f32.mrf.mxu0
        %v908 = vadd.f32 %v823, %v907
        %v909 = vpop.f32.mrf.mxu0
        %v910 = vadd.f32 %v823, %v909
        %911 = vmatmul.bf16.gmra.mxu0 %v803
        %v912 = vpop.f32.mrf.mxu0
        %v913 = vadd.f32 %v823, %v912
        %v914 = vpop.f32.mrf.mxu0
        %v915 = vadd.f32 %v823, %v914
        %916 = vmatmul.bf16.gmra.mxu0 %v804
        %v917 = vpop.f32.mrf.mxu0
        %v918 = vadd.f32 %v823, %v917
        %v919 = vpop.f32.mrf.mxu0
        %v920 = vadd.f32 %v823, %v919
        %921 = vdwg.mxu0
        %922 = vst [vmem:[%s291] sm:$0xff] %v883
        %923 = vst [vmem:[%s291 + $0x8] sm:$0xff] %v885
        %924 = vst [vmem:[%s291 + $0x10] sm:$0xff] %v888
        %925 = vst [vmem:[%s291 + $0x18] sm:$0xff] %v890
        %926 = vst [vmem:[%s291 + $0x20] sm:$0xff] %v893
        %927 = vst [vmem:[%s291 + $0x28] sm:$0xff] %v895
        %928 = vst [vmem:[%s291 + $0x30] sm:$0xff] %v898
        %929 = vst [vmem:[%s291 + $0x38] sm:$0xff] %v900
        %930 = vst [vmem:[%s291 + $0x40] sm:$0xff] %v903
        %931 = vst [vmem:[%s291 + $0x48] sm:$0xff] %v905
        %932 = vst [vmem:[%s291 + $0x50] sm:$0xff] %v908
        %933 = vst [vmem:[%s291 + $0x58] sm:$0xff] %v910
        %934 = vst [vmem:[%s291 + $0x60] sm:$0xff] %v913
        %935 = vst [vmem:[%s291 + $0x68] sm:$0xff] %v915
        %936 = vst [vmem:[%s291 + $0x70] sm:$0xff] %v918
        %937 = vst [vmem:[%s291 + $0x78] sm:$0xff] %v920
        %s938 = sand.u32 %s155, 1
        %s939 = scalar_lea.sflag [#allocation4], %s938
        %s940 = sand.u32 %s155, 1
        %s941 = smul.addr %s940, 128
        %s942 = scalar_lea.vmem [#allocation8], %s941
        // Predicated region
        $region53: #{tpu_custom_call.1} parent=39 // pred_check
          %p943 = pneg %p165
        $region54: #{tpu_custom_call.1} parent=39 // pred_check_branch
          %945 = sbr.rel (%p943) target = $region56
        $region55: #{tpu_custom_call.1} parent=39 // pred_region
          %s946 = smul.u32 16, %s28
          %948 = vsyncadd %s939, 0
          %s949 = smul.addr %s27, 32
          %s950 = sadd.s32 %s946, %s949
          %s951 = smul.addr %s950, 8
          %s952 = scalar_lea.hbm %s5, %s951
          %s953 = sshll.u32 %s942, 4
          %s954 = int_to_ptr.vmem [resolvable:$true] %s953
          %s955 = sshll.u32 %s952, 4
          %s956 = int_to_ptr.hbm [resolvable:$true] %s955
          %961 = dma.vmem_to_hbm [thread:$0]  %s954, 2048, %s956, %s939, 128, 128, 8
        $region56: #{tpu_custom_call.1} parent=39 // pred_fallthru
          _
      $region40: #{tpu_custom_call.1} parent=5 // pred_fallthru
        _
      %p962 = scmp.le.s32.totalorder 2, %s18
      // Predicated region
      $region57: #{tpu_custom_call.1} parent=5 // pred_check
        %p963 = pneg %p962
      $region58: #{tpu_custom_call.1} parent=5 // pred_check_branch
        %965 = sbr.rel (%p963) target = $region60
      $region59: #{tpu_custom_call.1} parent=5 // pred_region
        %s966 = ssub.s32 %s18, 2
        // Predicated region
        $region61: #{tpu_custom_call.1} parent=59 // pred_check
          %p967 = pneg %p171
        $region62: #{tpu_custom_call.1} parent=59 // pred_check_branch
          %969 = sbr.rel (%p967) target = $region64
        $region63: #{tpu_custom_call.1} parent=59 // pred_region
          %s970 = sand.u32 %s156, 1
          %s971 = scalar_lea.sflag [#allocation4], %s970
          %s972 = sand.u32 %s156, 1
          %s973 = smul.addr %s972, 128
          %s974 = scalar_lea.vmem [#allocation8], %s973
          %976 = dma.done %s971, 2048
        $region64: #{tpu_custom_call.1} parent=59 // pred_fallthru
          _
      $region60: #{tpu_custom_call.1} parent=5 // pred_fallthru
        _
    $region6: #{tpu_custom_call.1} parent=1 // loop_footer
      %s22 = sadd.s32 1, %s18
    $region7: #{tpu_custom_call.1} parent=1 // loop_footer_branch
      %17 = sbr.rel target = $region3
    $region8: #{tpu_custom_call.1} parent=1 // loop_exit
      _
    %977 = vsyncpa [#allocation3], 1
    %s978 = scalar_lea.sflag [#allocation3], 1
    %979 = vsyncpa %s978, 1
    %980 = vsyncpa [#allocation6], 1
    %981 = vsyncpa [#allocation4], 1
    %s982 = scalar_lea.sflag [#allocation4], 1
    %983 = vsyncpa %s982, 1

</llo_original>
